<compile_context>
chip_gen: v5e
topology: v5e:2x2
jax: 0.10.0
libtpu: 0.0.40
codegen_flags: <defaults>
</compile_context>

<pallas_src>
import functools

import jax
import jax.numpy as jnp
from jax import lax
from jax.experimental import pallas as pl
from jax.experimental.pallas import tpu as pltpu


def _softplus(x):
    # softplus(x) = log(1 + exp(x)), numerically stable; one exp + one log
    # (both on the EUP).
    return jnp.maximum(x, 0.0) + jnp.log(1.0 + jnp.exp(-jnp.abs(x)))


def _multibox_kernel(c0_ref, c1_ref, pos_ref, ploc_ref, gtloc_ref, pos4_ref,
                     out_ref, *, neg_pos_ratio):
    # Each ref holds one batch row in a sublane-dense (8, L) layout.
    c0 = c0_ref[0]                       # (8, L) f32
    c1 = c1_ref[0]                       # (8, L) f32
    posf = pos_ref[0]                    # (8, L) f32 in {0, 1}
    pos = posf > 0.5

    d = c1 - c0
    loss_bg = _softplus(d)               # -log p(class 0)  (2-class softmax)
    nlogp1 = _softplus(-d)               # -log p(class 1)

    num_pos = jnp.sum(posf)                          # exact integer in f32
    k_f = num_pos * neg_pos_ratio                    # negatives to keep

    # Positives are excluded from mining with -inf (negative int bit pattern,
    # so they can never pass a non-negative threshold below).
    mining = jnp.where(pos, -jnp.inf, loss_bg)
    # For x >= 0 the IEEE-754 bit pattern (viewed as signed i32) orders exactly
    # like the float value, so the search can run entirely in integer compares.
    mbits = pltpu.bitcast(mining, jnp.int32)         # (8, L) i32

    # 31-pass bitwise binary search (sign bit skipped) for the bit pattern of
    # T = K-th largest background loss: keep the largest pattern t such that
    # count(mining >= t) >= K.  Carried as a (1, 1) i32 so every op stays in
    # plain vector-compare / vector-select territory.
    bits = jnp.zeros((1, 1), jnp.int32)
    for b in range(30, -1, -1):
        cand = bits | jnp.int32(1 << b)                                  # (1,1)
        cnt = jnp.sum(jnp.where(mbits >= cand, 1.0, 0.0), keepdims=True)  # (1,1)
        bits = jnp.where(cnt >= k_f, cand, bits)

    sel_gt = mbits > bits                            # strictly above threshold
    cnt_gt = jnp.sum(jnp.where(sel_gt, 1.0, 0.0))
    sum_gt = jnp.sum(jnp.where(sel_gt, mining, 0.0))
    # Threshold value as f32.  Exact: some kept element carries these bits; in
    # the degenerate cases (num_pos == 0, or K exceeding the available
    # negatives) no element matches, the 0.0 fill is used and the tied term
    # below is provably 0 anyway (no NaN/inf path).
    thr = jnp.max(jnp.where(mbits == bits, mining, 0.0))

    # For mined negatives CE == background loss, so the exact mined sum is
    # sum(loss > T) + (K - count(loss > T)) * T; positives use -log p(class 1).
    cls_loss = (jnp.sum(jnp.where(pos, nlogp1, 0.0))
                + sum_gt + (k_f - cnt_gt) * thr)

    # Smooth-L1 (beta = 1, reduction='sum') over positive priors, lane-dense
    # (8, 4L) layout; pos4 is the 4x-expanded positive mask.
    diff = ploc_ref[0] - gtloc_ref[0]
    ad = jnp.abs(diff)
    sl1 = jnp.where(ad < 1.0, 0.5 * diff * diff, ad - 0.5)
    reg_loss = jnp.sum(jnp.where(pos4_ref[0] > 0.5, sl1, 0.0))

    lane = lax.broadcasted_iota(jnp.int32, (1, 128), 1)
    out_ref[0] = (jnp.where(lane == 0, reg_loss, 0.0)
                  + jnp.where(lane == 1, cls_loss, 0.0)
                  + jnp.where(lane == 2, num_pos, 0.0))


def multibox_loss(confidence, predicted_locations, labels, gt_locations,
                  neg_pos_ratio=3, *, lane_block=128):
    """confidence (B,N,2), predicted_locations (B,N,4), labels (B,N),
    gt_locations (B,N,4) -> (smooth_l1/num_pos, classification/num_pos)."""
    B, N, C = confidence.shape
    assert C == 2, "MultiBoxLoss.forward hardcodes num_classes = 2"

    tile = 8 * lane_block                       # (8, 128)-aligned row tiles
    np_pad = -(-N // tile) * tile
    pad = np_pad - N
    L = np_pad // 8

    c0 = confidence[:, :, 0].astype(jnp.float32)
    c1 = confidence[:, :, 1].astype(jnp.float32)
    posf = (labels > 0).astype(jnp.float32)
    pos4f = jnp.repeat(posf, 4, axis=1)                       # (B, 4N)
    ploc = predicted_locations.reshape(B, N * 4).astype(jnp.float32)
    gtloc = gt_locations.reshape(B, N * 4).astype(jnp.float32)

    if pad:
        # Sentinel padding: c0 = 0, c1 = -1e30 gives background loss exactly 0
        # and a zero positive mask, so padded priors can never outrank a real
        # hard negative and contribute exactly nothing if tied at T == 0.
        c0 = jnp.pad(c0, ((0, 0), (0, pad)), constant_values=0.0)
        c1 = jnp.pad(c1, ((0, 0), (0, pad)), constant_values=-1e30)
        posf = jnp.pad(posf, ((0, 0), (0, pad)))
        pos4f = jnp.pad(pos4f, ((0, 0), (0, 4 * pad)))
        ploc = jnp.pad(ploc, ((0, 0), (0, 4 * pad)))
        gtloc = jnp.pad(gtloc, ((0, 0), (0, 4 * pad)))

    # Sublane-dense (8, L) layout; all reductions are permutation-invariant and
    # pos/conf (resp. pos4/boxes) share the same row-major reshape, so
    # elementwise alignment is preserved.
    c0 = c0.reshape(B, 8, L)
    c1 = c1.reshape(B, 8, L)
    posf = posf.reshape(B, 8, L)
    ploc = ploc.reshape(B, 8, 4 * L)
    gtloc = gtloc.reshape(B, 8, 4 * L)
    pos4f = pos4f.reshape(B, 8, 4 * L)

    kernel = functools.partial(_multibox_kernel,
                               neg_pos_ratio=float(neg_pos_ratio))

    conf_spec = pl.BlockSpec((1, 8, L), lambda b: (b, 0, 0))
    box_spec = pl.BlockSpec((1, 8, 4 * L), lambda b: (b, 0, 0))

    out = pl.pallas_call(
        kernel,
        out_shape=jax.ShapeDtypeStruct((B, 1, 128), jnp.float32),
        grid_spec=pltpu.PrefetchScalarGridSpec(
            num_scalar_prefetch=0,
            grid=(B,),
            in_specs=[conf_spec, conf_spec, conf_spec,
                      box_spec, box_spec, box_spec],
            out_specs=pl.BlockSpec((1, 1, 128), lambda b: (b, 0, 0)),
        ),
        compiler_params=pltpu.CompilerParams(
            dimension_semantics=("parallel",),
        ),
    )(c0, c1, posf, ploc, gtloc, pos4f)

    reg_sum = jnp.sum(out[:, 0, 0])
    cls_sum = jnp.sum(out[:, 0, 1])
    total_pos = jnp.sum(out[:, 0, 2])
    # num_pos follows the reference's gt_locations[pos].view(-1, 8).size(0).
    num_pos = total_pos * 4.0 / 8.0
    # TODO(synk): num_pos == 0 divides by zero, same hazard as the PyTorch ref;
    # an odd total positive count silently yields a fractional divisor where
    # the reference's .view(-1, 8) would raise.
    return reg_sum / num_pos, cls_sum / num_pos


def multibox_loss_ref(confidence, predicted_locations, labels, gt_locations,
                      neg_pos_ratio=3):
    """Pure-JAX reference (same math, no Pallas)."""
    logp = jax.nn.log_softmax(confidence.astype(jnp.float32), axis=2)
    loss_bg = -logp[:, :, 0]
    pos_mask = labels > 0
    num_pos_row = jnp.sum(pos_mask.astype(jnp.int32), axis=1, keepdims=True)
    num_neg_row = num_pos_row * neg_pos_ratio
    mining = jnp.where(pos_mask, -jnp.inf, loss_bg)
    order = jnp.argsort(-mining, axis=1, stable=True)
    rank = jnp.argsort(order, axis=1, stable=True)
    mask = pos_mask | (rank < num_neg_row)
    ce = -jnp.take_along_axis(logp, labels[..., None].astype(jnp.int32),
                              axis=2)[..., 0]
    cls_loss = jnp.sum(jnp.where(mask, ce, 0.0))
    d = predicted_locations.astype(jnp.float32) - gt_locations.astype(jnp.float32)
    ad = jnp.abs(d)
    sl1 = jnp.where(ad < 1.0, 0.5 * d * d, ad - 0.5)
    reg_loss = jnp.sum(jnp.where(pos_mask[..., None], sl1, 0.0))
    num_pos = jnp.sum(pos_mask).astype(jnp.float32) * 4.0 / 8.0
    return reg_loss / num_pos, cls_loss / num_pos


if __name__ == "__main__":
    B, N = 2, 300                      # batch_size, num_priors (tests padding)
    neg_pos_ratio = 3

    key = jax.random.PRNGKey(0)
    k1, k2, k3 = jax.random.split(key, 3)
    confidence = jax.random.normal(k1, (B, N, 2), dtype=jnp.float32)
    predicted_locations = jax.random.normal(k2, (B, N, 4), dtype=jnp.float32)
    gt_locations = 0.5 * jax.random.normal(k3, (B, N, 4), dtype=jnp.float32)

    # Deterministic labels; total positives = 12 + 6 = 18 (even, so the
    # original .view(-1, 8) reshape is valid).
    pri = jnp.arange(N)
    labels = jnp.stack([(pri % 25 == 0).astype(jnp.int32),
                        (pri % 50 == 0).astype(jnp.int32)], axis=0)

    reg, cls = multibox_loss(confidence, predicted_locations, labels,
                             gt_locations, neg_pos_ratio=neg_pos_ratio)
    jax.block_until_ready((reg, cls))

    reg_r, cls_r = multibox_loss_ref(confidence, predicted_locations, labels,
                                     gt_locations, neg_pos_ratio=neg_pos_ratio)
    assert jnp.allclose(reg, reg_r, rtol=1e-5, atol=1e-4), (reg, reg_r)
    assert jnp.allclose(cls, cls_r, rtol=1e-5, atol=1e-4), (cls, cls_r)

    print("KERNEL_OK")
</pallas_src>

<mosaic_0001>
module attributes {stable_mosaic.version = 11 : i64} {
  func.func @_multibox_kernel(%arg0: i32, %arg1: memref<1x8x128xf32, #tpu.memory_space<vmem>>, %arg2: memref<1x8x128xf32, #tpu.memory_space<vmem>>, %arg3: memref<1x8x128xf32, #tpu.memory_space<vmem>>, %arg4: memref<1x8x512xf32, #tpu.memory_space<vmem>>, %arg5: memref<1x8x512xf32, #tpu.memory_space<vmem>>, %arg6: memref<1x8x512xf32, #tpu.memory_space<vmem>>, %arg7: memref<1x1x128xf32, #tpu.memory_space<vmem>>) attributes {dimension_semantics = [#tpu.dimension_semantics<parallel>], iteration_bounds = array<i64: 2>, scalar_prefetch = 0 : i64, scratch_operands = 0 : i64, tpu.core_type = #tpu.core_type<tc>, window_params = [{transform_indices = @transform_0, window_bounds = array<i64: 1, 8, 128>}, {transform_indices = @transform_1, window_bounds = array<i64: 1, 8, 128>}, {transform_indices = @transform_2, window_bounds = array<i64: 1, 8, 128>}, {transform_indices = @transform_3, window_bounds = array<i64: 1, 8, 512>}, {transform_indices = @transform_4, window_bounds = array<i64: 1, 8, 512>}, {transform_indices = @transform_5, window_bounds = array<i64: 1, 8, 512>}, {transform_indices = @transform_6, window_bounds = array<i64: 1, 1, 128>}]} {
    %c0 = arith.constant 0 : index
    %c0_0 = arith.constant 0 : index
    %c0_1 = arith.constant 0 : index
    %0 = vector.load %arg1[%c0, %c0_0, %c0_1] : memref<1x8x128xf32, #tpu.memory_space<vmem>>, vector<1x8x128xf32>
    %1 = vector.shape_cast %0 : vector<1x8x128xf32> to vector<8x128xf32>
    %c0_2 = arith.constant 0 : index
    %c0_3 = arith.constant 0 : index
    %c0_4 = arith.constant 0 : index
    %2 = vector.load %arg2[%c0_2, %c0_3, %c0_4] : memref<1x8x128xf32, #tpu.memory_space<vmem>>, vector<1x8x128xf32>
    %3 = vector.shape_cast %2 : vector<1x8x128xf32> to vector<8x128xf32>
    %c0_5 = arith.constant 0 : index
    %c0_6 = arith.constant 0 : index
    %c0_7 = arith.constant 0 : index
    %4 = vector.load %arg3[%c0_5, %c0_6, %c0_7] : memref<1x8x128xf32, #tpu.memory_space<vmem>>, vector<1x8x128xf32>
    %5 = vector.shape_cast %4 : vector<1x8x128xf32> to vector<8x128xf32>
    %cst = arith.constant 5.000000e-01 : f32
    %6 = vector.broadcast %cst : f32 to vector<8x128xf32>
    %7 = arith.cmpf ogt, %5, %6 : vector<8x128xf32>
    %8 = arith.subf %3, %1 : vector<8x128xf32>
    %cst_8 = arith.constant 0.000000e+00 : f32
    %9 = vector.broadcast %cst_8 : f32 to vector<8x128xf32>
    %10 = arith.maximumf %8, %9 : vector<8x128xf32>
    %11 = math.absf %8 : vector<8x128xf32>
    %cst_9 = arith.constant 0.000000e+00 : f32
    %12 = vector.broadcast %cst_9 : f32 to vector<8x128xf32>
    %13 = arith.subf %12, %11 : vector<8x128xf32>
    %14 = math.exp %13 : vector<8x128xf32>
    %cst_10 = arith.constant 1.000000e+00 : f32
    %15 = vector.broadcast %cst_10 : f32 to vector<8x128xf32>
    %16 = arith.addf %15, %14 : vector<8x128xf32>
    %17 = math.log %16 : vector<8x128xf32>
    %18 = arith.addf %10, %17 : vector<8x128xf32>
    %cst_11 = arith.constant 0.000000e+00 : f32
    %19 = vector.broadcast %cst_11 : f32 to vector<8x128xf32>
    %20 = arith.subf %19, %8 : vector<8x128xf32>
    %cst_12 = arith.constant 0.000000e+00 : f32
    %21 = vector.broadcast %cst_12 : f32 to vector<8x128xf32>
    %22 = arith.maximumf %20, %21 : vector<8x128xf32>
    %23 = math.absf %20 : vector<8x128xf32>
    %cst_13 = arith.constant 0.000000e+00 : f32
    %24 = vector.broadcast %cst_13 : f32 to vector<8x128xf32>
    %25 = arith.subf %24, %23 : vector<8x128xf32>
    %26 = math.exp %25 : vector<8x128xf32>
    %cst_14 = arith.constant 1.000000e+00 : f32
    %27 = vector.broadcast %cst_14 : f32 to vector<8x128xf32>
    %28 = arith.addf %27, %26 : vector<8x128xf32>
    %29 = math.log %28 : vector<8x128xf32>
    %30 = arith.addf %22, %29 : vector<8x128xf32>
    %31 = vector.shape_cast %5 : vector<8x128xf32> to vector<1x8x128xf32>
    %cst_15 = arith.constant dense<0.000000e+00> : vector<1xf32>
    %32 = vector.multi_reduction <add>, %31, %cst_15 [1, 2] : vector<1x8x128xf32> to vector<1xf32>
    %33 = vector.shape_cast %32 : vector<1xf32> to vector<1x1x1xf32>
    %34 = vector.extract %33[0, 0, 0] : f32 from vector<1x1x1xf32>
    %cst_16 = arith.constant 3.000000e+00 : f32
    %35 = arith.mulf %34, %cst_16 : f32
    %cst_17 = arith.constant 0xFF800000 : f32
    %36 = vector.broadcast %cst_17 : f32 to vector<8x128xf32>
    %37 = arith.select %7, %36, %18 : vector<8x128xi1>, vector<8x128xf32>
    %38 = tpu.bitcast %37 : vector<8x128xf32> -> vector<8x128xi32>
    %c0_i32 = arith.constant 0 : i32
    %39 = vector.broadcast %c0_i32 : i32 to vector<1x1xi32>
    %c1073741824_i32 = arith.constant 1073741824 : i32
    %40 = vector.broadcast %c1073741824_i32 : i32 to vector<1x1xi32>
    %41 = arith.ori %39, %40 : vector<1x1xi32>
    %42 = vector.broadcast %41 : vector<1x1xi32> to vector<8x128xi32>
    %43 = arith.cmpi sge, %38, %42 : vector<8x128xi32>
    %cst_18 = arith.constant 1.000000e+00 : f32
    %cst_19 = arith.constant 0.000000e+00 : f32
    %44 = vector.broadcast %cst_18 : f32 to vector<8x128xf32>
    %45 = vector.broadcast %cst_19 : f32 to vector<8x128xf32>
    %46 = arith.select %43, %44, %45 : vector<8x128xi1>, vector<8x128xf32>
    %47 = vector.shape_cast %46 : vector<8x128xf32> to vector<1x8x128xf32>
    %cst_20 = arith.constant dense<0.000000e+00> : vector<1xf32>
    %48 = vector.multi_reduction <add>, %47, %cst_20 [1, 2] : vector<1x8x128xf32> to vector<1xf32>
    %49 = vector.shape_cast %48 : vector<1xf32> to vector<1x1x1xf32>
    %50 = vector.extract %49[0, 0, 0] : f32 from vector<1x1x1xf32>
    %51 = vector.broadcast %50 : f32 to vector<1x1xf32>
    %52 = vector.broadcast %35 : f32 to vector<1x1xf32>
    %53 = arith.cmpf oge, %51, %52 : vector<1x1xf32>
    %54 = arith.select %53, %41, %39 : vector<1x1xi1>, vector<1x1xi32>
    %c536870912_i32 = arith.constant 536870912 : i32
    %55 = vector.broadcast %c536870912_i32 : i32 to vector<1x1xi32>
    %56 = arith.ori %54, %55 : vector<1x1xi32>
    %57 = vector.broadcast %56 : vector<1x1xi32> to vector<8x128xi32>
    %58 = arith.cmpi sge, %38, %57 : vector<8x128xi32>
    %cst_21 = arith.constant 1.000000e+00 : f32
    %cst_22 = arith.constant 0.000000e+00 : f32
    %59 = vector.broadcast %cst_21 : f32 to vector<8x128xf32>
    %60 = vector.broadcast %cst_22 : f32 to vector<8x128xf32>
    %61 = arith.select %58, %59, %60 : vector<8x128xi1>, vector<8x128xf32>
    %62 = vector.shape_cast %61 : vector<8x128xf32> to vector<1x8x128xf32>
    %cst_23 = arith.constant dense<0.000000e+00> : vector<1xf32>
    %63 = vector.multi_reduction <add>, %62, %cst_23 [1, 2] : vector<1x8x128xf32> to vector<1xf32>
    %64 = vector.shape_cast %63 : vector<1xf32> to vector<1x1x1xf32>
    %65 = vector.extract %64[0, 0, 0] : f32 from vector<1x1x1xf32>
    %66 = vector.broadcast %65 : f32 to vector<1x1xf32>
    %67 = vector.broadcast %35 : f32 to vector<1x1xf32>
    %68 = arith.cmpf oge, %66, %67 : vector<1x1xf32>
    %69 = arith.select %68, %56, %54 : vector<1x1xi1>, vector<1x1xi32>
    %c268435456_i32 = arith.constant 268435456 : i32
    %70 = vector.broadcast %c268435456_i32 : i32 to vector<1x1xi32>
    %71 = arith.ori %69, %70 : vector<1x1xi32>
    %72 = vector.broadcast %71 : vector<1x1xi32> to vector<8x128xi32>
    %73 = arith.cmpi sge, %38, %72 : vector<8x128xi32>
    %cst_24 = arith.constant 1.000000e+00 : f32
    %cst_25 = arith.constant 0.000000e+00 : f32
    %74 = vector.broadcast %cst_24 : f32 to vector<8x128xf32>
    %75 = vector.broadcast %cst_25 : f32 to vector<8x128xf32>
    %76 = arith.select %73, %74, %75 : vector<8x128xi1>, vector<8x128xf32>
    %77 = vector.shape_cast %76 : vector<8x128xf32> to vector<1x8x128xf32>
    %cst_26 = arith.constant dense<0.000000e+00> : vector<1xf32>
    %78 = vector.multi_reduction <add>, %77, %cst_26 [1, 2] : vector<1x8x128xf32> to vector<1xf32>
    %79 = vector.shape_cast %78 : vector<1xf32> to vector<1x1x1xf32>
    %80 = vector.extract %79[0, 0, 0] : f32 from vector<1x1x1xf32>
    %81 = vector.broadcast %80 : f32 to vector<1x1xf32>
    %82 = vector.broadcast %35 : f32 to vector<1x1xf32>
    %83 = arith.cmpf oge, %81, %82 : vector<1x1xf32>
    %84 = arith.select %83, %71, %69 : vector<1x1xi1>, vector<1x1xi32>
    %c134217728_i32 = arith.constant 134217728 : i32
    %85 = vector.broadcast %c134217728_i32 : i32 to vector<1x1xi32>
    %86 = arith.ori %84, %85 : vector<1x1xi32>
    %87 = vector.broadcast %86 : vector<1x1xi32> to vector<8x128xi32>
    %88 = arith.cmpi sge, %38, %87 : vector<8x128xi32>
    %cst_27 = arith.constant 1.000000e+00 : f32
    %cst_28 = arith.constant 0.000000e+00 : f32
    %89 = vector.broadcast %cst_27 : f32 to vector<8x128xf32>
    %90 = vector.broadcast %cst_28 : f32 to vector<8x128xf32>
    %91 = arith.select %88, %89, %90 : vector<8x128xi1>, vector<8x128xf32>
    %92 = vector.shape_cast %91 : vector<8x128xf32> to vector<1x8x128xf32>
    %cst_29 = arith.constant dense<0.000000e+00> : vector<1xf32>
    %93 = vector.multi_reduction <add>, %92, %cst_29 [1, 2] : vector<1x8x128xf32> to vector<1xf32>
    %94 = vector.shape_cast %93 : vector<1xf32> to vector<1x1x1xf32>
    %95 = vector.extract %94[0, 0, 0] : f32 from vector<1x1x1xf32>
    %96 = vector.broadcast %95 : f32 to vector<1x1xf32>
    %97 = vector.broadcast %35 : f32 to vector<1x1xf32>
    %98 = arith.cmpf oge, %96, %97 : vector<1x1xf32>
    %99 = arith.select %98, %86, %84 : vector<1x1xi1>, vector<1x1xi32>
    %c67108864_i32 = arith.constant 67108864 : i32
    %100 = vector.broadcast %c67108864_i32 : i32 to vector<1x1xi32>
    %101 = arith.ori %99, %100 : vector<1x1xi32>
    %102 = vector.broadcast %101 : vector<1x1xi32> to vector<8x128xi32>
    %103 = arith.cmpi sge, %38, %102 : vector<8x128xi32>
    %cst_30 = arith.constant 1.000000e+00 : f32
    %cst_31 = arith.constant 0.000000e+00 : f32
    %104 = vector.broadcast %cst_30 : f32 to vector<8x128xf32>
    %105 = vector.broadcast %cst_31 : f32 to vector<8x128xf32>
    %106 = arith.select %103, %104, %105 : vector<8x128xi1>, vector<8x128xf32>
    %107 = vector.shape_cast %106 : vector<8x128xf32> to vector<1x8x128xf32>
    %cst_32 = arith.constant dense<0.000000e+00> : vector<1xf32>
    %108 = vector.multi_reduction <add>, %107, %cst_32 [1, 2] : vector<1x8x128xf32> to vector<1xf32>
    %109 = vector.shape_cast %108 : vector<1xf32> to vector<1x1x1xf32>
    %110 = vector.extract %109[0, 0, 0] : f32 from vector<1x1x1xf32>
    %111 = vector.broadcast %110 : f32 to vector<1x1xf32>
    %112 = vector.broadcast %35 : f32 to vector<1x1xf32>
    %113 = arith.cmpf oge, %111, %112 : vector<1x1xf32>
    %114 = arith.select %113, %101, %99 : vector<1x1xi1>, vector<1x1xi32>
    %c33554432_i32 = arith.constant 33554432 : i32
    %115 = vector.broadcast %c33554432_i32 : i32 to vector<1x1xi32>
    %116 = arith.ori %114, %115 : vector<1x1xi32>
    %117 = vector.broadcast %116 : vector<1x1xi32> to vector<8x128xi32>
    %118 = arith.cmpi sge, %38, %117 : vector<8x128xi32>
    %cst_33 = arith.constant 1.000000e+00 : f32
    %cst_34 = arith.constant 0.000000e+00 : f32
    %119 = vector.broadcast %cst_33 : f32 to vector<8x128xf32>
    %120 = vector.broadcast %cst_34 : f32 to vector<8x128xf32>
    %121 = arith.select %118, %119, %120 : vector<8x128xi1>, vector<8x128xf32>
    %122 = vector.shape_cast %121 : vector<8x128xf32> to vector<1x8x128xf32>
    %cst_35 = arith.constant dense<0.000000e+00> : vector<1xf32>
    %123 = vector.multi_reduction <add>, %122, %cst_35 [1, 2] : vector<1x8x128xf32> to vector<1xf32>
    %124 = vector.shape_cast %123 : vector<1xf32> to vector<1x1x1xf32>
    %125 = vector.extract %124[0, 0, 0] : f32 from vector<1x1x1xf32>
    %126 = vector.broadcast %125 : f32 to vector<1x1xf32>
    %127 = vector.broadcast %35 : f32 to vector<1x1xf32>
    %128 = arith.cmpf oge, %126, %127 : vector<1x1xf32>
    %129 = arith.select %128, %116, %114 : vector<1x1xi1>, vector<1x1xi32>
    %c16777216_i32 = arith.constant 16777216 : i32
    %130 = vector.broadcast %c16777216_i32 : i32 to vector<1x1xi32>
    %131 = arith.ori %129, %130 : vector<1x1xi32>
    %132 = vector.broadcast %131 : vector<1x1xi32> to vector<8x128xi32>
    %133 = arith.cmpi sge, %38, %132 : vector<8x128xi32>
    %cst_36 = arith.constant 1.000000e+00 : f32
    %cst_37 = arith.constant 0.000000e+00 : f32
    %134 = vector.broadcast %cst_36 : f32 to vector<8x128xf32>
    %135 = vector.broadcast %cst_37 : f32 to vector<8x128xf32>
    %136 = arith.select %133, %134, %135 : vector<8x128xi1>, vector<8x128xf32>
    %137 = vector.shape_cast %136 : vector<8x128xf32> to vector<1x8x128xf32>
    %cst_38 = arith.constant dense<0.000000e+00> : vector<1xf32>
    %138 = vector.multi_reduction <add>, %137, %cst_38 [1, 2] : vector<1x8x128xf32> to vector<1xf32>
    %139 = vector.shape_cast %138 : vector<1xf32> to vector<1x1x1xf32>
    %140 = vector.extract %139[0, 0, 0] : f32 from vector<1x1x1xf32>
    %141 = vector.broadcast %140 : f32 to vector<1x1xf32>
    %142 = vector.broadcast %35 : f32 to vector<1x1xf32>
    %143 = arith.cmpf oge, %141, %142 : vector<1x1xf32>
    %144 = arith.select %143, %131, %129 : vector<1x1xi1>, vector<1x1xi32>
    %c8388608_i32 = arith.constant 8388608 : i32
    %145 = vector.broadcast %c8388608_i32 : i32 to vector<1x1xi32>
    %146 = arith.ori %144, %145 : vector<1x1xi32>
    %147 = vector.broadcast %146 : vector<1x1xi32> to vector<8x128xi32>
    %148 = arith.cmpi sge, %38, %147 : vector<8x128xi32>
    %cst_39 = arith.constant 1.000000e+00 : f32
    %cst_40 = arith.constant 0.000000e+00 : f32
    %149 = vector.broadcast %cst_39 : f32 to vector<8x128xf32>
    %150 = vector.broadcast %cst_40 : f32 to vector<8x128xf32>
    %151 = arith.select %148, %149, %150 : vector<8x128xi1>, vector<8x128xf32>
    %152 = vector.shape_cast %151 : vector<8x128xf32> to vector<1x8x128xf32>
    %cst_41 = arith.constant dense<0.000000e+00> : vector<1xf32>
    %153 = vector.multi_reduction <add>, %152, %cst_41 [1, 2] : vector<1x8x128xf32> to vector<1xf32>
    %154 = vector.shape_cast %153 : vector<1xf32> to vector<1x1x1xf32>
    %155 = vector.extract %154[0, 0, 0] : f32 from vector<1x1x1xf32>
    %156 = vector.broadcast %155 : f32 to vector<1x1xf32>
    %157 = vector.broadcast %35 : f32 to vector<1x1xf32>
    %158 = arith.cmpf oge, %156, %157 : vector<1x1xf32>
    %159 = arith.select %158, %146, %144 : vector<1x1xi1>, vector<1x1xi32>
    %c4194304_i32 = arith.constant 4194304 : i32
    %160 = vector.broadcast %c4194304_i32 : i32 to vector<1x1xi32>
    %161 = arith.ori %159, %160 : vector<1x1xi32>
    %162 = vector.broadcast %161 : vector<1x1xi32> to vector<8x128xi32>
    %163 = arith.cmpi sge, %38, %162 : vector<8x128xi32>
    %cst_42 = arith.constant 1.000000e+00 : f32
    %cst_43 = arith.constant 0.000000e+00 : f32
    %164 = vector.broadcast %cst_42 : f32 to vector<8x128xf32>
    %165 = vector.broadcast %cst_43 : f32 to vector<8x128xf32>
    %166 = arith.select %163, %164, %165 : vector<8x128xi1>, vector<8x128xf32>
    %167 = vector.shape_cast %166 : vector<8x128xf32> to vector<1x8x128xf32>
    %cst_44 = arith.constant dense<0.000000e+00> : vector<1xf32>
    %168 = vector.multi_reduction <add>, %167, %cst_44 [1, 2] : vector<1x8x128xf32> to vector<1xf32>
    %169 = vector.shape_cast %168 : vector<1xf32> to vector<1x1x1xf32>
    %170 = vector.extract %169[0, 0, 0] : f32 from vector<1x1x1xf32>
    %171 = vector.broadcast %170 : f32 to vector<1x1xf32>
    %172 = vector.broadcast %35 : f32 to vector<1x1xf32>
    %173 = arith.cmpf oge, %171, %172 : vector<1x1xf32>
    %174 = arith.select %173, %161, %159 : vector<1x1xi1>, vector<1x1xi32>
    %c2097152_i32 = arith.constant 2097152 : i32
    %175 = vector.broadcast %c2097152_i32 : i32 to vector<1x1xi32>
    %176 = arith.ori %174, %175 : vector<1x1xi32>
    %177 = vector.broadcast %176 : vector<1x1xi32> to vector<8x128xi32>
    %178 = arith.cmpi sge, %38, %177 : vector<8x128xi32>
    %cst_45 = arith.constant 1.000000e+00 : f32
    %cst_46 = arith.constant 0.000000e+00 : f32
    %179 = vector.broadcast %cst_45 : f32 to vector<8x128xf32>
    %180 = vector.broadcast %cst_46 : f32 to vector<8x128xf32>
    %181 = arith.select %178, %179, %180 : vector<8x128xi1>, vector<8x128xf32>
    %182 = vector.shape_cast %181 : vector<8x128xf32> to vector<1x8x128xf32>
    %cst_47 = arith.constant dense<0.000000e+00> : vector<1xf32>
    %183 = vector.multi_reduction <add>, %182, %cst_47 [1, 2] : vector<1x8x128xf32> to vector<1xf32>
    %184 = vector.shape_cast %183 : vector<1xf32> to vector<1x1x1xf32>
    %185 = vector.extract %184[0, 0, 0] : f32 from vector<1x1x1xf32>
    %186 = vector.broadcast %185 : f32 to vector<1x1xf32>
    %187 = vector.broadcast %35 : f32 to vector<1x1xf32>
    %188 = arith.cmpf oge, %186, %187 : vector<1x1xf32>
    %189 = arith.select %188, %176, %174 : vector<1x1xi1>, vector<1x1xi32>
    %c1048576_i32 = arith.constant 1048576 : i32
    %190 = vector.broadcast %c1048576_i32 : i32 to vector<1x1xi32>
    %191 = arith.ori %189, %190 : vector<1x1xi32>
    %192 = vector.broadcast %191 : vector<1x1xi32> to vector<8x128xi32>
    %193 = arith.cmpi sge, %38, %192 : vector<8x128xi32>
    %cst_48 = arith.constant 1.000000e+00 : f32
    %cst_49 = arith.constant 0.000000e+00 : f32
    %194 = vector.broadcast %cst_48 : f32 to vector<8x128xf32>
    %195 = vector.broadcast %cst_49 : f32 to vector<8x128xf32>
    %196 = arith.select %193, %194, %195 : vector<8x128xi1>, vector<8x128xf32>
    %197 = vector.shape_cast %196 : vector<8x128xf32> to vector<1x8x128xf32>
    %cst_50 = arith.constant dense<0.000000e+00> : vector<1xf32>
    %198 = vector.multi_reduction <add>, %197, %cst_50 [1, 2] : vector<1x8x128xf32> to vector<1xf32>
    %199 = vector.shape_cast %198 : vector<1xf32> to vector<1x1x1xf32>
    %200 = vector.extract %199[0, 0, 0] : f32 from vector<1x1x1xf32>
    %201 = vector.broadcast %200 : f32 to vector<1x1xf32>
    %202 = vector.broadcast %35 : f32 to vector<1x1xf32>
    %203 = arith.cmpf oge, %201, %202 : vector<1x1xf32>
    %204 = arith.select %203, %191, %189 : vector<1x1xi1>, vector<1x1xi32>
    %c524288_i32 = arith.constant 524288 : i32
    %205 = vector.broadcast %c524288_i32 : i32 to vector<1x1xi32>
    %206 = arith.ori %204, %205 : vector<1x1xi32>
    %207 = vector.broadcast %206 : vector<1x1xi32> to vector<8x128xi32>
    %208 = arith.cmpi sge, %38, %207 : vector<8x128xi32>
    %cst_51 = arith.constant 1.000000e+00 : f32
    %cst_52 = arith.constant 0.000000e+00 : f32
    %209 = vector.broadcast %cst_51 : f32 to vector<8x128xf32>
    %210 = vector.broadcast %cst_52 : f32 to vector<8x128xf32>
    %211 = arith.select %208, %209, %210 : vector<8x128xi1>, vector<8x128xf32>
    %212 = vector.shape_cast %211 : vector<8x128xf32> to vector<1x8x128xf32>
    %cst_53 = arith.constant dense<0.000000e+00> : vector<1xf32>
    %213 = vector.multi_reduction <add>, %212, %cst_53 [1, 2] : vector<1x8x128xf32> to vector<1xf32>
    %214 = vector.shape_cast %213 : vector<1xf32> to vector<1x1x1xf32>
    %215 = vector.extract %214[0, 0, 0] : f32 from vector<1x1x1xf32>
    %216 = vector.broadcast %215 : f32 to vector<1x1xf32>
    %217 = vector.broadcast %35 : f32 to vector<1x1xf32>
    %218 = arith.cmpf oge, %216, %217 : vector<1x1xf32>
    %219 = arith.select %218, %206, %204 : vector<1x1xi1>, vector<1x1xi32>
    %c262144_i32 = arith.constant 262144 : i32
    %220 = vector.broadcast %c262144_i32 : i32 to vector<1x1xi32>
    %221 = arith.ori %219, %220 : vector<1x1xi32>
    %222 = vector.broadcast %221 : vector<1x1xi32> to vector<8x128xi32>
    %223 = arith.cmpi sge, %38, %222 : vector<8x128xi32>
    %cst_54 = arith.constant 1.000000e+00 : f32
    %cst_55 = arith.constant 0.000000e+00 : f32
    %224 = vector.broadcast %cst_54 : f32 to vector<8x128xf32>
    %225 = vector.broadcast %cst_55 : f32 to vector<8x128xf32>
    %226 = arith.select %223, %224, %225 : vector<8x128xi1>, vector<8x128xf32>
    %227 = vector.shape_cast %226 : vector<8x128xf32> to vector<1x8x128xf32>
    %cst_56 = arith.constant dense<0.000000e+00> : vector<1xf32>
    %228 = vector.multi_reduction <add>, %227, %cst_56 [1, 2] : vector<1x8x128xf32> to vector<1xf32>
    %229 = vector.shape_cast %228 : vector<1xf32> to vector<1x1x1xf32>
    %230 = vector.extract %229[0, 0, 0] : f32 from vector<1x1x1xf32>
    %231 = vector.broadcast %230 : f32 to vector<1x1xf32>
    %232 = vector.broadcast %35 : f32 to vector<1x1xf32>
    %233 = arith.cmpf oge, %231, %232 : vector<1x1xf32>
    %234 = arith.select %233, %221, %219 : vector<1x1xi1>, vector<1x1xi32>
    %c131072_i32 = arith.constant 131072 : i32
    %235 = vector.broadcast %c131072_i32 : i32 to vector<1x1xi32>
    %236 = arith.ori %234, %235 : vector<1x1xi32>
    %237 = vector.broadcast %236 : vector<1x1xi32> to vector<8x128xi32>
    %238 = arith.cmpi sge, %38, %237 : vector<8x128xi32>
    %cst_57 = arith.constant 1.000000e+00 : f32
    %cst_58 = arith.constant 0.000000e+00 : f32
    %239 = vector.broadcast %cst_57 : f32 to vector<8x128xf32>
    %240 = vector.broadcast %cst_58 : f32 to vector<8x128xf32>
    %241 = arith.select %238, %239, %240 : vector<8x128xi1>, vector<8x128xf32>
    %242 = vector.shape_cast %241 : vector<8x128xf32> to vector<1x8x128xf32>
    %cst_59 = arith.constant dense<0.000000e+00> : vector<1xf32>
    %243 = vector.multi_reduction <add>, %242, %cst_59 [1, 2] : vector<1x8x128xf32> to vector<1xf32>
    %244 = vector.shape_cast %243 : vector<1xf32> to vector<1x1x1xf32>
    %245 = vector.extract %244[0, 0, 0] : f32 from vector<1x1x1xf32>
    %246 = vector.broadcast %245 : f32 to vector<1x1xf32>
    %247 = vector.broadcast %35 : f32 to vector<1x1xf32>
    %248 = arith.cmpf oge, %246, %247 : vector<1x1xf32>
    %249 = arith.select %248, %236, %234 : vector<1x1xi1>, vector<1x1xi32>
    %c65536_i32 = arith.constant 65536 : i32
    %250 = vector.broadcast %c65536_i32 : i32 to vector<1x1xi32>
    %251 = arith.ori %249, %250 : vector<1x1xi32>
    %252 = vector.broadcast %251 : vector<1x1xi32> to vector<8x128xi32>
    %253 = arith.cmpi sge, %38, %252 : vector<8x128xi32>
    %cst_60 = arith.constant 1.000000e+00 : f32
    %cst_61 = arith.constant 0.000000e+00 : f32
    %254 = vector.broadcast %cst_60 : f32 to vector<8x128xf32>
    %255 = vector.broadcast %cst_61 : f32 to vector<8x128xf32>
    %256 = arith.select %253, %254, %255 : vector<8x128xi1>, vector<8x128xf32>
    %257 = vector.shape_cast %256 : vector<8x128xf32> to vector<1x8x128xf32>
    %cst_62 = arith.constant dense<0.000000e+00> : vector<1xf32>
    %258 = vector.multi_reduction <add>, %257, %cst_62 [1, 2] : vector<1x8x128xf32> to vector<1xf32>
    %259 = vector.shape_cast %258 : vector<1xf32> to vector<1x1x1xf32>
    %260 = vector.extract %259[0, 0, 0] : f32 from vector<1x1x1xf32>
    %261 = vector.broadcast %260 : f32 to vector<1x1xf32>
    %262 = vector.broadcast %35 : f32 to vector<1x1xf32>
    %263 = arith.cmpf oge, %261, %262 : vector<1x1xf32>
    %264 = arith.select %263, %251, %249 : vector<1x1xi1>, vector<1x1xi32>
    %c32768_i32 = arith.constant 32768 : i32
    %265 = vector.broadcast %c32768_i32 : i32 to vector<1x1xi32>
    %266 = arith.ori %264, %265 : vector<1x1xi32>
    %267 = vector.broadcast %266 : vector<1x1xi32> to vector<8x128xi32>
    %268 = arith.cmpi sge, %38, %267 : vector<8x128xi32>
    %cst_63 = arith.constant 1.000000e+00 : f32
    %cst_64 = arith.constant 0.000000e+00 : f32
    %269 = vector.broadcast %cst_63 : f32 to vector<8x128xf32>
    %270 = vector.broadcast %cst_64 : f32 to vector<8x128xf32>
    %271 = arith.select %268, %269, %270 : vector<8x128xi1>, vector<8x128xf32>
    %272 = vector.shape_cast %271 : vector<8x128xf32> to vector<1x8x128xf32>
    %cst_65 = arith.constant dense<0.000000e+00> : vector<1xf32>
    %273 = vector.multi_reduction <add>, %272, %cst_65 [1, 2] : vector<1x8x128xf32> to vector<1xf32>
    %274 = vector.shape_cast %273 : vector<1xf32> to vector<1x1x1xf32>
    %275 = vector.extract %274[0, 0, 0] : f32 from vector<1x1x1xf32>
    %276 = vector.broadcast %275 : f32 to vector<1x1xf32>
    %277 = vector.broadcast %35 : f32 to vector<1x1xf32>
    %278 = arith.cmpf oge, %276, %277 : vector<1x1xf32>
    %279 = arith.select %278, %266, %264 : vector<1x1xi1>, vector<1x1xi32>
    %c16384_i32 = arith.constant 16384 : i32
    %280 = vector.broadcast %c16384_i32 : i32 to vector<1x1xi32>
    %281 = arith.ori %279, %280 : vector<1x1xi32>
    %282 = vector.broadcast %281 : vector<1x1xi32> to vector<8x128xi32>
    %283 = arith.cmpi sge, %38, %282 : vector<8x128xi32>
    %cst_66 = arith.constant 1.000000e+00 : f32
    %cst_67 = arith.constant 0.000000e+00 : f32
    %284 = vector.broadcast %cst_66 : f32 to vector<8x128xf32>
    %285 = vector.broadcast %cst_67 : f32 to vector<8x128xf32>
    %286 = arith.select %283, %284, %285 : vector<8x128xi1>, vector<8x128xf32>
    %287 = vector.shape_cast %286 : vector<8x128xf32> to vector<1x8x128xf32>
    %cst_68 = arith.constant dense<0.000000e+00> : vector<1xf32>
    %288 = vector.multi_reduction <add>, %287, %cst_68 [1, 2] : vector<1x8x128xf32> to vector<1xf32>
    %289 = vector.shape_cast %288 : vector<1xf32> to vector<1x1x1xf32>
    %290 = vector.extract %289[0, 0, 0] : f32 from vector<1x1x1xf32>
    %291 = vector.broadcast %290 : f32 to vector<1x1xf32>
    %292 = vector.broadcast %35 : f32 to vector<1x1xf32>
    %293 = arith.cmpf oge, %291, %292 : vector<1x1xf32>
    %294 = arith.select %293, %281, %279 : vector<1x1xi1>, vector<1x1xi32>
    %c8192_i32 = arith.constant 8192 : i32
    %295 = vector.broadcast %c8192_i32 : i32 to vector<1x1xi32>
    %296 = arith.ori %294, %295 : vector<1x1xi32>
    %297 = vector.broadcast %296 : vector<1x1xi32> to vector<8x128xi32>
    %298 = arith.cmpi sge, %38, %297 : vector<8x128xi32>
    %cst_69 = arith.constant 1.000000e+00 : f32
    %cst_70 = arith.constant 0.000000e+00 : f32
    %299 = vector.broadcast %cst_69 : f32 to vector<8x128xf32>
    %300 = vector.broadcast %cst_70 : f32 to vector<8x128xf32>
    %301 = arith.select %298, %299, %300 : vector<8x128xi1>, vector<8x128xf32>
    %302 = vector.shape_cast %301 : vector<8x128xf32> to vector<1x8x128xf32>
    %cst_71 = arith.constant dense<0.000000e+00> : vector<1xf32>
    %303 = vector.multi_reduction <add>, %302, %cst_71 [1, 2] : vector<1x8x128xf32> to vector<1xf32>
    %304 = vector.shape_cast %303 : vector<1xf32> to vector<1x1x1xf32>
    %305 = vector.extract %304[0, 0, 0] : f32 from vector<1x1x1xf32>
    %306 = vector.broadcast %305 : f32 to vector<1x1xf32>
    %307 = vector.broadcast %35 : f32 to vector<1x1xf32>
    %308 = arith.cmpf oge, %306, %307 : vector<1x1xf32>
    %309 = arith.select %308, %296, %294 : vector<1x1xi1>, vector<1x1xi32>
    %c4096_i32 = arith.constant 4096 : i32
    %310 = vector.broadcast %c4096_i32 : i32 to vector<1x1xi32>
    %311 = arith.ori %309, %310 : vector<1x1xi32>
    %312 = vector.broadcast %311 : vector<1x1xi32> to vector<8x128xi32>
    %313 = arith.cmpi sge, %38, %312 : vector<8x128xi32>
    %cst_72 = arith.constant 1.000000e+00 : f32
    %cst_73 = arith.constant 0.000000e+00 : f32
    %314 = vector.broadcast %cst_72 : f32 to vector<8x128xf32>
    %315 = vector.broadcast %cst_73 : f32 to vector<8x128xf32>
    %316 = arith.select %313, %314, %315 : vector<8x128xi1>, vector<8x128xf32>
    %317 = vector.shape_cast %316 : vector<8x128xf32> to vector<1x8x128xf32>
    %cst_74 = arith.constant dense<0.000000e+00> : vector<1xf32>
    %318 = vector.multi_reduction <add>, %317, %cst_74 [1, 2] : vector<1x8x128xf32> to vector<1xf32>
    %319 = vector.shape_cast %318 : vector<1xf32> to vector<1x1x1xf32>
    %320 = vector.extract %319[0, 0, 0] : f32 from vector<1x1x1xf32>
    %321 = vector.broadcast %320 : f32 to vector<1x1xf32>
    %322 = vector.broadcast %35 : f32 to vector<1x1xf32>
    %323 = arith.cmpf oge, %321, %322 : vector<1x1xf32>
    %324 = arith.select %323, %311, %309 : vector<1x1xi1>, vector<1x1xi32>
    %c2048_i32 = arith.constant 2048 : i32
    %325 = vector.broadcast %c2048_i32 : i32 to vector<1x1xi32>
    %326 = arith.ori %324, %325 : vector<1x1xi32>
    %327 = vector.broadcast %326 : vector<1x1xi32> to vector<8x128xi32>
    %328 = arith.cmpi sge, %38, %327 : vector<8x128xi32>
    %cst_75 = arith.constant 1.000000e+00 : f32
    %cst_76 = arith.constant 0.000000e+00 : f32
    %329 = vector.broadcast %cst_75 : f32 to vector<8x128xf32>
    %330 = vector.broadcast %cst_76 : f32 to vector<8x128xf32>
    %331 = arith.select %328, %329, %330 : vector<8x128xi1>, vector<8x128xf32>
    %332 = vector.shape_cast %331 : vector<8x128xf32> to vector<1x8x128xf32>
    %cst_77 = arith.constant dense<0.000000e+00> : vector<1xf32>
    %333 = vector.multi_reduction <add>, %332, %cst_77 [1, 2] : vector<1x8x128xf32> to vector<1xf32>
    %334 = vector.shape_cast %333 : vector<1xf32> to vector<1x1x1xf32>
    %335 = vector.extract %334[0, 0, 0] : f32 from vector<1x1x1xf32>
    %336 = vector.broadcast %335 : f32 to vector<1x1xf32>
    %337 = vector.broadcast %35 : f32 to vector<1x1xf32>
    %338 = arith.cmpf oge, %336, %337 : vector<1x1xf32>
    %339 = arith.select %338, %326, %324 : vector<1x1xi1>, vector<1x1xi32>
    %c1024_i32 = arith.constant 1024 : i32
    %340 = vector.broadcast %c1024_i32 : i32 to vector<1x1xi32>
    %341 = arith.ori %339, %340 : vector<1x1xi32>
    %342 = vector.broadcast %341 : vector<1x1xi32> to vector<8x128xi32>
    %343 = arith.cmpi sge, %38, %342 : vector<8x128xi32>
    %cst_78 = arith.constant 1.000000e+00 : f32
    %cst_79 = arith.constant 0.000000e+00 : f32
    %344 = vector.broadcast %cst_78 : f32 to vector<8x128xf32>
    %345 = vector.broadcast %cst_79 : f32 to vector<8x128xf32>
    %346 = arith.select %343, %344, %345 : vector<8x128xi1>, vector<8x128xf32>
    %347 = vector.shape_cast %346 : vector<8x128xf32> to vector<1x8x128xf32>
    %cst_80 = arith.constant dense<0.000000e+00> : vector<1xf32>
    %348 = vector.multi_reduction <add>, %347, %cst_80 [1, 2] : vector<1x8x128xf32> to vector<1xf32>
    %349 = vector.shape_cast %348 : vector<1xf32> to vector<1x1x1xf32>
    %350 = vector.extract %349[0, 0, 0] : f32 from vector<1x1x1xf32>
    %351 = vector.broadcast %350 : f32 to vector<1x1xf32>
    %352 = vector.broadcast %35 : f32 to vector<1x1xf32>
    %353 = arith.cmpf oge, %351, %352 : vector<1x1xf32>
    %354 = arith.select %353, %341, %339 : vector<1x1xi1>, vector<1x1xi32>
    %c512_i32 = arith.constant 512 : i32
    %355 = vector.broadcast %c512_i32 : i32 to vector<1x1xi32>
    %356 = arith.ori %354, %355 : vector<1x1xi32>
    %357 = vector.broadcast %356 : vector<1x1xi32> to vector<8x128xi32>
    %358 = arith.cmpi sge, %38, %357 : vector<8x128xi32>
    %cst_81 = arith.constant 1.000000e+00 : f32
    %cst_82 = arith.constant 0.000000e+00 : f32
    %359 = vector.broadcast %cst_81 : f32 to vector<8x128xf32>
    %360 = vector.broadcast %cst_82 : f32 to vector<8x128xf32>
    %361 = arith.select %358, %359, %360 : vector<8x128xi1>, vector<8x128xf32>
    %362 = vector.shape_cast %361 : vector<8x128xf32> to vector<1x8x128xf32>
    %cst_83 = arith.constant dense<0.000000e+00> : vector<1xf32>
    %363 = vector.multi_reduction <add>, %362, %cst_83 [1, 2] : vector<1x8x128xf32> to vector<1xf32>
    %364 = vector.shape_cast %363 : vector<1xf32> to vector<1x1x1xf32>
    %365 = vector.extract %364[0, 0, 0] : f32 from vector<1x1x1xf32>
    %366 = vector.broadcast %365 : f32 to vector<1x1xf32>
    %367 = vector.broadcast %35 : f32 to vector<1x1xf32>
    %368 = arith.cmpf oge, %366, %367 : vector<1x1xf32>
    %369 = arith.select %368, %356, %354 : vector<1x1xi1>, vector<1x1xi32>
    %c256_i32 = arith.constant 256 : i32
    %370 = vector.broadcast %c256_i32 : i32 to vector<1x1xi32>
    %371 = arith.ori %369, %370 : vector<1x1xi32>
    %372 = vector.broadcast %371 : vector<1x1xi32> to vector<8x128xi32>
    %373 = arith.cmpi sge, %38, %372 : vector<8x128xi32>
    %cst_84 = arith.constant 1.000000e+00 : f32
    %cst_85 = arith.constant 0.000000e+00 : f32
    %374 = vector.broadcast %cst_84 : f32 to vector<8x128xf32>
    %375 = vector.broadcast %cst_85 : f32 to vector<8x128xf32>
    %376 = arith.select %373, %374, %375 : vector<8x128xi1>, vector<8x128xf32>
    %377 = vector.shape_cast %376 : vector<8x128xf32> to vector<1x8x128xf32>
    %cst_86 = arith.constant dense<0.000000e+00> : vector<1xf32>
    %378 = vector.multi_reduction <add>, %377, %cst_86 [1, 2] : vector<1x8x128xf32> to vector<1xf32>
    %379 = vector.shape_cast %378 : vector<1xf32> to vector<1x1x1xf32>
    %380 = vector.extract %379[0, 0, 0] : f32 from vector<1x1x1xf32>
    %381 = vector.broadcast %380 : f32 to vector<1x1xf32>
    %382 = vector.broadcast %35 : f32 to vector<1x1xf32>
    %383 = arith.cmpf oge, %381, %382 : vector<1x1xf32>
    %384 = arith.select %383, %371, %369 : vector<1x1xi1>, vector<1x1xi32>
    %c128_i32 = arith.constant 128 : i32
    %385 = vector.broadcast %c128_i32 : i32 to vector<1x1xi32>
    %386 = arith.ori %384, %385 : vector<1x1xi32>
    %387 = vector.broadcast %386 : vector<1x1xi32> to vector<8x128xi32>
    %388 = arith.cmpi sge, %38, %387 : vector<8x128xi32>
    %cst_87 = arith.constant 1.000000e+00 : f32
    %cst_88 = arith.constant 0.000000e+00 : f32
    %389 = vector.broadcast %cst_87 : f32 to vector<8x128xf32>
    %390 = vector.broadcast %cst_88 : f32 to vector<8x128xf32>
    %391 = arith.select %388, %389, %390 : vector<8x128xi1>, vector<8x128xf32>
    %392 = vector.shape_cast %391 : vector<8x128xf32> to vector<1x8x128xf32>
    %cst_89 = arith.constant dense<0.000000e+00> : vector<1xf32>
    %393 = vector.multi_reduction <add>, %392, %cst_89 [1, 2] : vector<1x8x128xf32> to vector<1xf32>
    %394 = vector.shape_cast %393 : vector<1xf32> to vector<1x1x1xf32>
    %395 = vector.extract %394[0, 0, 0] : f32 from vector<1x1x1xf32>
    %396 = vector.broadcast %395 : f32 to vector<1x1xf32>
    %397 = vector.broadcast %35 : f32 to vector<1x1xf32>
    %398 = arith.cmpf oge, %396, %397 : vector<1x1xf32>
    %399 = arith.select %398, %386, %384 : vector<1x1xi1>, vector<1x1xi32>
    %c64_i32 = arith.constant 64 : i32
    %400 = vector.broadcast %c64_i32 : i32 to vector<1x1xi32>
    %401 = arith.ori %399, %400 : vector<1x1xi32>
    %402 = vector.broadcast %401 : vector<1x1xi32> to vector<8x128xi32>
    %403 = arith.cmpi sge, %38, %402 : vector<8x128xi32>
    %cst_90 = arith.constant 1.000000e+00 : f32
    %cst_91 = arith.constant 0.000000e+00 : f32
    %404 = vector.broadcast %cst_90 : f32 to vector<8x128xf32>
    %405 = vector.broadcast %cst_91 : f32 to vector<8x128xf32>
    %406 = arith.select %403, %404, %405 : vector<8x128xi1>, vector<8x128xf32>
    %407 = vector.shape_cast %406 : vector<8x128xf32> to vector<1x8x128xf32>
    %cst_92 = arith.constant dense<0.000000e+00> : vector<1xf32>
    %408 = vector.multi_reduction <add>, %407, %cst_92 [1, 2] : vector<1x8x128xf32> to vector<1xf32>
    %409 = vector.shape_cast %408 : vector<1xf32> to vector<1x1x1xf32>
    %410 = vector.extract %409[0, 0, 0] : f32 from vector<1x1x1xf32>
    %411 = vector.broadcast %410 : f32 to vector<1x1xf32>
    %412 = vector.broadcast %35 : f32 to vector<1x1xf32>
    %413 = arith.cmpf oge, %411, %412 : vector<1x1xf32>
    %414 = arith.select %413, %401, %399 : vector<1x1xi1>, vector<1x1xi32>
    %c32_i32 = arith.constant 32 : i32
    %415 = vector.broadcast %c32_i32 : i32 to vector<1x1xi32>
    %416 = arith.ori %414, %415 : vector<1x1xi32>
    %417 = vector.broadcast %416 : vector<1x1xi32> to vector<8x128xi32>
    %418 = arith.cmpi sge, %38, %417 : vector<8x128xi32>
    %cst_93 = arith.constant 1.000000e+00 : f32
    %cst_94 = arith.constant 0.000000e+00 : f32
    %419 = vector.broadcast %cst_93 : f32 to vector<8x128xf32>
    %420 = vector.broadcast %cst_94 : f32 to vector<8x128xf32>
    %421 = arith.select %418, %419, %420 : vector<8x128xi1>, vector<8x128xf32>
    %422 = vector.shape_cast %421 : vector<8x128xf32> to vector<1x8x128xf32>
    %cst_95 = arith.constant dense<0.000000e+00> : vector<1xf32>
    %423 = vector.multi_reduction <add>, %422, %cst_95 [1, 2] : vector<1x8x128xf32> to vector<1xf32>
    %424 = vector.shape_cast %423 : vector<1xf32> to vector<1x1x1xf32>
    %425 = vector.extract %424[0, 0, 0] : f32 from vector<1x1x1xf32>
    %426 = vector.broadcast %425 : f32 to vector<1x1xf32>
    %427 = vector.broadcast %35 : f32 to vector<1x1xf32>
    %428 = arith.cmpf oge, %426, %427 : vector<1x1xf32>
    %429 = arith.select %428, %416, %414 : vector<1x1xi1>, vector<1x1xi32>
    %c16_i32 = arith.constant 16 : i32
    %430 = vector.broadcast %c16_i32 : i32 to vector<1x1xi32>
    %431 = arith.ori %429, %430 : vector<1x1xi32>
    %432 = vector.broadcast %431 : vector<1x1xi32> to vector<8x128xi32>
    %433 = arith.cmpi sge, %38, %432 : vector<8x128xi32>
    %cst_96 = arith.constant 1.000000e+00 : f32
    %cst_97 = arith.constant 0.000000e+00 : f32
    %434 = vector.broadcast %cst_96 : f32 to vector<8x128xf32>
    %435 = vector.broadcast %cst_97 : f32 to vector<8x128xf32>
    %436 = arith.select %433, %434, %435 : vector<8x128xi1>, vector<8x128xf32>
    %437 = vector.shape_cast %436 : vector<8x128xf32> to vector<1x8x128xf32>
    %cst_98 = arith.constant dense<0.000000e+00> : vector<1xf32>
    %438 = vector.multi_reduction <add>, %437, %cst_98 [1, 2] : vector<1x8x128xf32> to vector<1xf32>
    %439 = vector.shape_cast %438 : vector<1xf32> to vector<1x1x1xf32>
    %440 = vector.extract %439[0, 0, 0] : f32 from vector<1x1x1xf32>
    %441 = vector.broadcast %440 : f32 to vector<1x1xf32>
    %442 = vector.broadcast %35 : f32 to vector<1x1xf32>
    %443 = arith.cmpf oge, %441, %442 : vector<1x1xf32>
    %444 = arith.select %443, %431, %429 : vector<1x1xi1>, vector<1x1xi32>
    %c8_i32 = arith.constant 8 : i32
    %445 = vector.broadcast %c8_i32 : i32 to vector<1x1xi32>
    %446 = arith.ori %444, %445 : vector<1x1xi32>
    %447 = vector.broadcast %446 : vector<1x1xi32> to vector<8x128xi32>
    %448 = arith.cmpi sge, %38, %447 : vector<8x128xi32>
    %cst_99 = arith.constant 1.000000e+00 : f32
    %cst_100 = arith.constant 0.000000e+00 : f32
    %449 = vector.broadcast %cst_99 : f32 to vector<8x128xf32>
    %450 = vector.broadcast %cst_100 : f32 to vector<8x128xf32>
    %451 = arith.select %448, %449, %450 : vector<8x128xi1>, vector<8x128xf32>
    %452 = vector.shape_cast %451 : vector<8x128xf32> to vector<1x8x128xf32>
    %cst_101 = arith.constant dense<0.000000e+00> : vector<1xf32>
    %453 = vector.multi_reduction <add>, %452, %cst_101 [1, 2] : vector<1x8x128xf32> to vector<1xf32>
    %454 = vector.shape_cast %453 : vector<1xf32> to vector<1x1x1xf32>
    %455 = vector.extract %454[0, 0, 0] : f32 from vector<1x1x1xf32>
    %456 = vector.broadcast %455 : f32 to vector<1x1xf32>
    %457 = vector.broadcast %35 : f32 to vector<1x1xf32>
    %458 = arith.cmpf oge, %456, %457 : vector<1x1xf32>
    %459 = arith.select %458, %446, %444 : vector<1x1xi1>, vector<1x1xi32>
    %c4_i32 = arith.constant 4 : i32
    %460 = vector.broadcast %c4_i32 : i32 to vector<1x1xi32>
    %461 = arith.ori %459, %460 : vector<1x1xi32>
    %462 = vector.broadcast %461 : vector<1x1xi32> to vector<8x128xi32>
    %463 = arith.cmpi sge, %38, %462 : vector<8x128xi32>
    %cst_102 = arith.constant 1.000000e+00 : f32
    %cst_103 = arith.constant 0.000000e+00 : f32
    %464 = vector.broadcast %cst_102 : f32 to vector<8x128xf32>
    %465 = vector.broadcast %cst_103 : f32 to vector<8x128xf32>
    %466 = arith.select %463, %464, %465 : vector<8x128xi1>, vector<8x128xf32>
    %467 = vector.shape_cast %466 : vector<8x128xf32> to vector<1x8x128xf32>
    %cst_104 = arith.constant dense<0.000000e+00> : vector<1xf32>
    %468 = vector.multi_reduction <add>, %467, %cst_104 [1, 2] : vector<1x8x128xf32> to vector<1xf32>
    %469 = vector.shape_cast %468 : vector<1xf32> to vector<1x1x1xf32>
    %470 = vector.extract %469[0, 0, 0] : f32 from vector<1x1x1xf32>
    %471 = vector.broadcast %470 : f32 to vector<1x1xf32>
    %472 = vector.broadcast %35 : f32 to vector<1x1xf32>
    %473 = arith.cmpf oge, %471, %472 : vector<1x1xf32>
    %474 = arith.select %473, %461, %459 : vector<1x1xi1>, vector<1x1xi32>
    %c2_i32 = arith.constant 2 : i32
    %475 = vector.broadcast %c2_i32 : i32 to vector<1x1xi32>
    %476 = arith.ori %474, %475 : vector<1x1xi32>
    %477 = vector.broadcast %476 : vector<1x1xi32> to vector<8x128xi32>
    %478 = arith.cmpi sge, %38, %477 : vector<8x128xi32>
    %cst_105 = arith.constant 1.000000e+00 : f32
    %cst_106 = arith.constant 0.000000e+00 : f32
    %479 = vector.broadcast %cst_105 : f32 to vector<8x128xf32>
    %480 = vector.broadcast %cst_106 : f32 to vector<8x128xf32>
    %481 = arith.select %478, %479, %480 : vector<8x128xi1>, vector<8x128xf32>
    %482 = vector.shape_cast %481 : vector<8x128xf32> to vector<1x8x128xf32>
    %cst_107 = arith.constant dense<0.000000e+00> : vector<1xf32>
    %483 = vector.multi_reduction <add>, %482, %cst_107 [1, 2] : vector<1x8x128xf32> to vector<1xf32>
    %484 = vector.shape_cast %483 : vector<1xf32> to vector<1x1x1xf32>
    %485 = vector.extract %484[0, 0, 0] : f32 from vector<1x1x1xf32>
    %486 = vector.broadcast %485 : f32 to vector<1x1xf32>
    %487 = vector.broadcast %35 : f32 to vector<1x1xf32>
    %488 = arith.cmpf oge, %486, %487 : vector<1x1xf32>
    %489 = arith.select %488, %476, %474 : vector<1x1xi1>, vector<1x1xi32>
    %c1_i32 = arith.constant 1 : i32
    %490 = vector.broadcast %c1_i32 : i32 to vector<1x1xi32>
    %491 = arith.ori %489, %490 : vector<1x1xi32>
    %492 = vector.broadcast %491 : vector<1x1xi32> to vector<8x128xi32>
    %493 = arith.cmpi sge, %38, %492 : vector<8x128xi32>
    %cst_108 = arith.constant 1.000000e+00 : f32
    %cst_109 = arith.constant 0.000000e+00 : f32
    %494 = vector.broadcast %cst_108 : f32 to vector<8x128xf32>
    %495 = vector.broadcast %cst_109 : f32 to vector<8x128xf32>
    %496 = arith.select %493, %494, %495 : vector<8x128xi1>, vector<8x128xf32>
    %497 = vector.shape_cast %496 : vector<8x128xf32> to vector<1x8x128xf32>
    %cst_110 = arith.constant dense<0.000000e+00> : vector<1xf32>
    %498 = vector.multi_reduction <add>, %497, %cst_110 [1, 2] : vector<1x8x128xf32> to vector<1xf32>
    %499 = vector.shape_cast %498 : vector<1xf32> to vector<1x1x1xf32>
    %500 = vector.extract %499[0, 0, 0] : f32 from vector<1x1x1xf32>
    %501 = vector.broadcast %500 : f32 to vector<1x1xf32>
    %502 = vector.broadcast %35 : f32 to vector<1x1xf32>
    %503 = arith.cmpf oge, %501, %502 : vector<1x1xf32>
    %504 = arith.select %503, %491, %489 : vector<1x1xi1>, vector<1x1xi32>
    %505 = vector.broadcast %504 : vector<1x1xi32> to vector<8x128xi32>
    %506 = arith.cmpi sgt, %38, %505 : vector<8x128xi32>
    %cst_111 = arith.constant 1.000000e+00 : f32
    %cst_112 = arith.constant 0.000000e+00 : f32
    %507 = vector.broadcast %cst_111 : f32 to vector<8x128xf32>
    %508 = vector.broadcast %cst_112 : f32 to vector<8x128xf32>
    %509 = arith.select %506, %507, %508 : vector<8x128xi1>, vector<8x128xf32>
    %510 = vector.shape_cast %509 : vector<8x128xf32> to vector<1x8x128xf32>
    %cst_113 = arith.constant dense<0.000000e+00> : vector<1xf32>
    %511 = vector.multi_reduction <add>, %510, %cst_113 [1, 2] : vector<1x8x128xf32> to vector<1xf32>
    %512 = vector.shape_cast %511 : vector<1xf32> to vector<1x1x1xf32>
    %513 = vector.extract %512[0, 0, 0] : f32 from vector<1x1x1xf32>
    %cst_114 = arith.constant 0.000000e+00 : f32
    %514 = vector.broadcast %cst_114 : f32 to vector<8x128xf32>
    %515 = arith.select %506, %37, %514 : vector<8x128xi1>, vector<8x128xf32>
    %516 = vector.shape_cast %515 : vector<8x128xf32> to vector<1x8x128xf32>
    %cst_115 = arith.constant dense<0.000000e+00> : vector<1xf32>
    %517 = vector.multi_reduction <add>, %516, %cst_115 [1, 2] : vector<1x8x128xf32> to vector<1xf32>
    %518 = vector.shape_cast %517 : vector<1xf32> to vector<1x1x1xf32>
    %519 = vector.extract %518[0, 0, 0] : f32 from vector<1x1x1xf32>
    %520 = vector.broadcast %504 : vector<1x1xi32> to vector<8x128xi32>
    %521 = arith.cmpi eq, %38, %520 : vector<8x128xi32>
    %cst_116 = arith.constant 0.000000e+00 : f32
    %522 = vector.broadcast %cst_116 : f32 to vector<8x128xf32>
    %523 = arith.select %521, %37, %522 : vector<8x128xi1>, vector<8x128xf32>
    %524 = vector.shape_cast %523 : vector<8x128xf32> to vector<1x8x128xf32>
    %cst_117 = arith.constant dense<0xFF800000> : vector<1xf32>
    %525 = vector.multi_reduction <maximumf>, %524, %cst_117 [1, 2] : vector<1x8x128xf32> to vector<1xf32>
    %526 = vector.shape_cast %525 : vector<1xf32> to vector<1x1x1xf32>
    %527 = vector.extract %526[0, 0, 0] : f32 from vector<1x1x1xf32>
    %cst_118 = arith.constant 0.000000e+00 : f32
    %528 = vector.broadcast %cst_118 : f32 to vector<8x128xf32>
    %529 = arith.select %7, %30, %528 : vector<8x128xi1>, vector<8x128xf32>
    %530 = vector.shape_cast %529 : vector<8x128xf32> to vector<1x8x128xf32>
    %cst_119 = arith.constant dense<0.000000e+00> : vector<1xf32>
    %531 = vector.multi_reduction <add>, %530, %cst_119 [1, 2] : vector<1x8x128xf32> to vector<1xf32>
    %532 = vector.shape_cast %531 : vector<1xf32> to vector<1x1x1xf32>
    %533 = vector.extract %532[0, 0, 0] : f32 from vector<1x1x1xf32>
    %534 = arith.addf %533, %519 : f32
    %535 = arith.subf %35, %513 : f32
    %536 = arith.mulf %535, %527 : f32
    %537 = arith.addf %534, %536 : f32
    %c0_120 = arith.constant 0 : index
    %c0_121 = arith.constant 0 : index
    %c0_122 = arith.constant 0 : index
    %538 = vector.load %arg4[%c0_120, %c0_121, %c0_122] : memref<1x8x512xf32, #tpu.memory_space<vmem>>, vector<1x8x512xf32>
    %539 = vector.shape_cast %538 : vector<1x8x512xf32> to vector<8x512xf32>
    %c0_123 = arith.constant 0 : index
    %c0_124 = arith.constant 0 : index
    %c0_125 = arith.constant 0 : index
    %540 = vector.load %arg5[%c0_123, %c0_124, %c0_125] : memref<1x8x512xf32, #tpu.memory_space<vmem>>, vector<1x8x512xf32>
    %541 = vector.shape_cast %540 : vector<1x8x512xf32> to vector<8x512xf32>
    %542 = arith.subf %539, %541 : vector<8x512xf32>
    %543 = math.absf %542 : vector<8x512xf32>
    %cst_126 = arith.constant 1.000000e+00 : f32
    %544 = vector.broadcast %cst_126 : f32 to vector<8x512xf32>
    %545 = arith.cmpf olt, %543, %544 : vector<8x512xf32>
    %cst_127 = arith.constant 5.000000e-01 : f32
    %546 = vector.broadcast %cst_127 : f32 to vector<8x512xf32>
    %547 = arith.mulf %546, %542 : vector<8x512xf32>
    %548 = arith.mulf %547, %542 : vector<8x512xf32>
    %cst_128 = arith.constant 5.000000e-01 : f32
    %549 = vector.broadcast %cst_128 : f32 to vector<8x512xf32>
    %550 = arith.subf %543, %549 : vector<8x512xf32>
    %551 = arith.select %545, %548, %550 : vector<8x512xi1>, vector<8x512xf32>
    %c0_129 = arith.constant 0 : index
    %c0_130 = arith.constant 0 : index
    %c0_131 = arith.constant 0 : index
    %552 = vector.load %arg6[%c0_129, %c0_130, %c0_131] : memref<1x8x512xf32, #tpu.memory_space<vmem>>, vector<1x8x512xf32>
    %553 = vector.shape_cast %552 : vector<1x8x512xf32> to vector<8x512xf32>
    %cst_132 = arith.constant 5.000000e-01 : f32
    %554 = vector.broadcast %cst_132 : f32 to vector<8x512xf32>
    %555 = arith.cmpf ogt, %553, %554 : vector<8x512xf32>
    %cst_133 = arith.constant 0.000000e+00 : f32
    %556 = vector.broadcast %cst_133 : f32 to vector<8x512xf32>
    %557 = arith.select %555, %551, %556 : vector<8x512xi1>, vector<8x512xf32>
    %558 = vector.shape_cast %557 : vector<8x512xf32> to vector<1x8x512xf32>
    %cst_134 = arith.constant dense<0.000000e+00> : vector<1xf32>
    %559 = vector.multi_reduction <add>, %558, %cst_134 [1, 2] : vector<1x8x512xf32> to vector<1xf32>
    %560 = vector.shape_cast %559 : vector<1xf32> to vector<1x1x1xf32>
    %561 = vector.extract %560[0, 0, 0] : f32 from vector<1x1x1xf32>
    %562 = tpu.iota {dimensions = array<i32: 1>} : vector<1x128xi32>
    %c0_i32_135 = arith.constant 0 : i32
    %563 = vector.broadcast %c0_i32_135 : i32 to vector<1x128xi32>
    %564 = arith.cmpi eq, %562, %563 : vector<1x128xi32>
    %cst_136 = arith.constant 0.000000e+00 : f32
    %565 = vector.broadcast %561 : f32 to vector<1x128xf32>
    %566 = vector.broadcast %cst_136 : f32 to vector<1x128xf32>
    %567 = arith.select %564, %565, %566 : vector<1x128xi1>, vector<1x128xf32>
    %c1_i32_137 = arith.constant 1 : i32
    %568 = vector.broadcast %c1_i32_137 : i32 to vector<1x128xi32>
    %569 = arith.cmpi eq, %562, %568 : vector<1x128xi32>
    %cst_138 = arith.constant 0.000000e+00 : f32
    %570 = vector.broadcast %537 : f32 to vector<1x128xf32>
    %571 = vector.broadcast %cst_138 : f32 to vector<1x128xf32>
    %572 = arith.select %569, %570, %571 : vector<1x128xi1>, vector<1x128xf32>
    %573 = arith.addf %567, %572 : vector<1x128xf32>
    %c2_i32_139 = arith.constant 2 : i32
    %574 = vector.broadcast %c2_i32_139 : i32 to vector<1x128xi32>
    %575 = arith.cmpi eq, %562, %574 : vector<1x128xi32>
    %cst_140 = arith.constant 0.000000e+00 : f32
    %576 = vector.broadcast %34 : f32 to vector<1x128xf32>
    %577 = vector.broadcast %cst_140 : f32 to vector<1x128xf32>
    %578 = arith.select %575, %576, %577 : vector<1x128xi1>, vector<1x128xf32>
    %579 = arith.addf %573, %578 : vector<1x128xf32>
    %c0_141 = arith.constant 0 : index
    %c0_142 = arith.constant 0 : index
    %c0_143 = arith.constant 0 : index
    %580 = vector.load %arg7[%c0_141, %c0_142, %c0_143] : memref<1x1x128xf32, #tpu.memory_space<vmem>>, vector<1x1x128xf32>
    %581 = vector.shape_cast %580 : vector<1x1x128xf32> to vector<1x128xf32>
    %582 = vector.shape_cast %579 : vector<1x128xf32> to vector<1x1x128xf32>
    tpu.vector_store %arg7[%c0_141, %c0_142, %c0_143], %582 {strides = array<i32>} : memref<1x1x128xf32, #tpu.memory_space<vmem>>, vector<1x1x128xf32>,
    return
  }
  func.func @transform_0(%arg0: i32) -> (i32, i32, i32) {
    %c0_i32 = arith.constant 0 : i32
    %c0_i32_0 = arith.constant 0 : i32
    %c0_i32_1 = arith.constant 0 : i32
    return %arg0, %c0_i32, %c0_i32_0 : i32, i32, i32
  }
  func.func @transform_1(%arg0: i32) -> (i32, i32, i32) {
    %c0_i32 = arith.constant 0 : i32
    %c0_i32_0 = arith.constant 0 : i32
    %c0_i32_1 = arith.constant 0 : i32
    return %arg0, %c0_i32, %c0_i32_0 : i32, i32, i32
  }
  func.func @transform_2(%arg0: i32) -> (i32, i32, i32) {
    %c0_i32 = arith.constant 0 : i32
    %c0_i32_0 = arith.constant 0 : i32
    %c0_i32_1 = arith.constant 0 : i32
    return %arg0, %c0_i32, %c0_i32_0 : i32, i32, i32
  }
  func.func @transform_3(%arg0: i32) -> (i32, i32, i32) {
    %c0_i32 = arith.constant 0 : i32
    %c0_i32_0 = arith.constant 0 : i32
    %c0_i32_1 = arith.constant 0 : i32
    return %arg0, %c0_i32, %c0_i32_0 : i32, i32, i32
  }
  func.func @transform_4(%arg0: i32) -> (i32, i32, i32) {
    %c0_i32 = arith.constant 0 : i32
    %c0_i32_0 = arith.constant 0 : i32
    %c0_i32_1 = arith.constant 0 : i32
    return %arg0, %c0_i32, %c0_i32_0 : i32, i32, i32
  }
  func.func @transform_5(%arg0: i32) -> (i32, i32, i32) {
    %c0_i32 = arith.constant 0 : i32
    %c0_i32_0 = arith.constant 0 : i32
    %c0_i32_1 = arith.constant 0 : i32
    return %arg0, %c0_i32, %c0_i32_0 : i32, i32, i32
  }
  func.func @transform_6(%arg0: i32) -> (i32, i32, i32) {
    %c0_i32 = arith.constant 0 : i32
    %c0_i32_0 = arith.constant 0 : i32
    %c0_i32_1 = arith.constant 0 : i32
    return %arg0, %c0_i32, %c0_i32_0 : i32, i32, i32
  }
}

</mosaic_0001>

<llo_original>
// kernel: tpu_custom_call.1
$region0: #{tpu_custom_call.1}
  #allocation0 [shape = 'u32[]', space=smem, size = 0x4, offset = 0x4, fixed_abs, tag = 'smem constant byte address 0x4 - core index']
  #allocation1 [shape = 'u32[72,128]{1,0:T(1,128)}', space=vmem, size = 0x9000, scoped, tag = 'internal scratch']
  %s0 = inlined_call_operand.hbm [shape: f32[2,8,128], index: 0, kind: input, shape index: {}]
  %s1 = inlined_call_operand.hbm [shape: f32[2,8,128], index: 1, kind: input, shape index: {}]
  %s2 = inlined_call_operand.hbm [shape: f32[2,8,128], index: 2, kind: input, shape index: {}]
  %s3 = inlined_call_operand.hbm [shape: f32[2,8,512], index: 3, kind: input, shape index: {}]
  %s4 = inlined_call_operand.hbm [shape: f32[2,8,512], index: 4, kind: input, shape index: {}]
  %s5 = inlined_call_operand.hbm [shape: f32[2,8,512], index: 5, kind: input, shape index: {}]
  %s6 = inlined_call_operand.hbm [shape: f32[2,1,128], index: 6, kind: output, shape index: {}]
  %s7 = sld [smem:[#allocation0]]
  $region81: #{tpu_custom_call.1} parent=0
    _
  %s9 = ssub.s32 1, %s7
  %s10 = scalar_select 0, %s9, %s7
  $region1: #{tpu_custom_call.1} parent=0
    #allocation2 [shape = 'u8[8192]{0}', space=vmem, size = 0x2000, scoped, tag = 'input window, operand 0']
    #allocation3 [shape = 's32[2]{0}', space=sflag, size = 0x8, scoped, tag = 'scoped memory for tpu_custom_call.1']
    #allocation4 [shape = 's32[2]{0}', space=sflag, size = 0x8, scoped, tag = 'scoped memory for tpu_custom_call.1']
    #allocation5 [shape = 'u8[8192]{0}', space=vmem, size = 0x2000, scoped, tag = 'input window, operand 1']
    #allocation6 [shape = 's32[2]{0}', space=sflag, size = 0x8, scoped, tag = 'scoped memory for tpu_custom_call.1']
    #allocation7 [shape = 'u8[8192]{0}', space=vmem, size = 0x2000, scoped, tag = 'input window, operand 2']
    #allocation8 [shape = 'u8[32768]{0}', space=vmem, size = 0x8000, scoped, tag = 'input window, operand 3']
    #allocation9 [shape = 's32[2]{0}', space=sflag, size = 0x8, scoped, tag = 'scoped memory for tpu_custom_call.1']
    #allocation10 [shape = 'u8[32768]{0}', space=vmem, size = 0x8000, scoped, tag = 'input window, operand 4']
    #allocation11 [shape = 'u8[32768]{0}', space=vmem, size = 0x8000, scoped, tag = 'input window, operand 5']
    #allocation12 [shape = 's32[2]{0}', space=sflag, size = 0x8, scoped, tag = 'scoped memory for tpu_custom_call.1']
    #allocation13 [shape = 'u8[1024]{0}', space=vmem, size = 0x400, scoped, tag = 'output window, operand 0']
    %11 = vsyncpa [#allocation3], 0
    %s12 = scalar_lea.sflag [#allocation3], 1
    %13 = vsyncpa %s12, 0
    %14 = vsyncpa [#allocation6], 0
    %s15 = scalar_lea.sflag [#allocation6], 1
    %16 = vsyncpa %s15, 0
    %17 = vsyncpa [#allocation9], 0
    %s18 = scalar_lea.sflag [#allocation9], 1
    %19 = vsyncpa %s18, 0
    %20 = vsyncpa [#allocation12], 0
    %s21 = scalar_lea.sflag [#allocation12], 1
    %22 = vsyncpa %s21, 0
    %23 = vsyncpa [#allocation4], 0
    %s24 = scalar_lea.sflag [#allocation4], 1
    %25 = vsyncpa %s24, 0
    loop: start=0, step=1, limit=4
    $region2: #{tpu_custom_call.1} parent=1 // loop_pre_header
      _
    $region3: #{tpu_custom_call.1} parent=1 // loop_header
      %s27 = sphi 0, %s31
      %p28 = scmp.ge.s32.totalorder %s27, 4
      %s37 = sphi 0, %s39
      %s40 = sphi 0, %s37
      %s41 = sphi 0, %s40
      %s57 = sphi 0, %s41
      %s63 = sphi 0, %s65
      %s66 = sphi 0, %s63
      %s67 = sphi 0, %s66
      %s83 = sphi 0, %s67
      %s89 = sphi 0, %s91
      %s92 = sphi 0, %s89
      %s93 = sphi 0, %s92
      %s109 = sphi 0, %s93
      %s115 = sphi 0, %s117
      %s118 = sphi 0, %s115
      %s119 = sphi 0, %s118
      %s135 = sphi 0, %s119
      %s141 = sphi 0, %s143
      %s144 = sphi 0, %s141
      %s145 = sphi 0, %s144
      %s161 = sphi 0, %s145
      %s167 = sphi 0, %s169
      %s170 = sphi 0, %s167
      %s171 = sphi 0, %s170
      %s187 = sphi 0, %s171
      %s193 = sphi 0, %s195
      %s196 = sphi 0, %s193
      %s197 = sphi 0, %s196
      %s213 = sphi 0, %s197
    $region4: #{tpu_custom_call.1} parent=1 // loop_header_branch
      %30 = sbr.rel (%p28) target = $region8
    $region5: #{tpu_custom_call.1} parent=1 // loop_body
      %s32 = ssub.s32 %s27, 1
      %s33 = ssub.s32 %s27, 2
      %s34 = sadd.s32 %s27, 1
      %s35 = ssub.s32 %s27, %s34
      %p36 = scmp.eq.s32.totalorder %s35, 0
      %s38 = sadd.s32 %s37, 1
      %s39 = scalar_select %p36, %s37, %s38
      %p42 = pneg %p36
      %p43 = scmp.eq.s32.totalorder %s27, 1
      %p44 = por %p42, %p43
      %p45 = scmp.ne.s32.totalorder %s37, %s40
      %p46 = scmp.eq.s32.totalorder %s27, 0
      %p47 = por %p45, %p46
      %p48 = scmp.ne.s32.totalorder %s37, %s40
      %p49 = scmp.eq.s32.totalorder %s32, 1
      %p50 = por %p48, %p49
      %p51 = scmp.ne.s32.totalorder %s40, %s41
      %p52 = scmp.eq.s32.totalorder %s32, 0
      %p53 = por %p51, %p52
      %p54 = scmp.ne.s32.totalorder %s40, %s41
      %p55 = scmp.eq.s32.totalorder %s33, 1
      %p56 = por %p54, %p55
      %p58 = scmp.ne.s32.totalorder %s41, %s57
      %p59 = scmp.eq.s32.totalorder %s33, 0
      %p60 = por %p58, %p59
      %s61 = ssub.s32 %s27, %s34
      %p62 = scmp.eq.s32.totalorder %s61, 0
      %s64 = sadd.s32 %s63, 1
      %s65 = scalar_select %p62, %s63, %s64
      %p68 = pneg %p62
      %p69 = scmp.eq.s32.totalorder %s27, 1
      %p70 = por %p68, %p69
      %p71 = scmp.ne.s32.totalorder %s63, %s66
      %p72 = scmp.eq.s32.totalorder %s27, 0
      %p73 = por %p71, %p72
      %p74 = scmp.ne.s32.totalorder %s63, %s66
      %p75 = scmp.eq.s32.totalorder %s32, 1
      %p76 = por %p74, %p75
      %p77 = scmp.ne.s32.totalorder %s66, %s67
      %p78 = scmp.eq.s32.totalorder %s32, 0
      %p79 = por %p77, %p78
      %p80 = scmp.ne.s32.totalorder %s66, %s67
      %p81 = scmp.eq.s32.totalorder %s33, 1
      %p82 = por %p80, %p81
      %p84 = scmp.ne.s32.totalorder %s67, %s83
      %p85 = scmp.eq.s32.totalorder %s33, 0
      %p86 = por %p84, %p85
      %s87 = ssub.s32 %s27, %s34
      %p88 = scmp.eq.s32.totalorder %s87, 0
      %s90 = sadd.s32 %s89, 1
      %s91 = scalar_select %p88, %s89, %s90
      %p94 = pneg %p88
      %p95 = scmp.eq.s32.totalorder %s27, 1
      %p96 = por %p94, %p95
      %p97 = scmp.ne.s32.totalorder %s89, %s92
      %p98 = scmp.eq.s32.totalorder %s27, 0
      %p99 = por %p97, %p98
      %p100 = scmp.ne.s32.totalorder %s89, %s92
      %p101 = scmp.eq.s32.totalorder %s32, 1
      %p102 = por %p100, %p101
      %p103 = scmp.ne.s32.totalorder %s92, %s93
      %p104 = scmp.eq.s32.totalorder %s32, 0
      %p105 = por %p103, %p104
      %p106 = scmp.ne.s32.totalorder %s92, %s93
      %p107 = scmp.eq.s32.totalorder %s33, 1
      %p108 = por %p106, %p107
      %p110 = scmp.ne.s32.totalorder %s93, %s109
      %p111 = scmp.eq.s32.totalorder %s33, 0
      %p112 = por %p110, %p111
      %s113 = ssub.s32 %s27, %s34
      %p114 = scmp.eq.s32.totalorder %s113, 0
      %s116 = sadd.s32 %s115, 1
      %s117 = scalar_select %p114, %s115, %s116
      %p120 = pneg %p114
      %p121 = scmp.eq.s32.totalorder %s27, 1
      %p122 = por %p120, %p121
      %p123 = scmp.ne.s32.totalorder %s115, %s118
      %p124 = scmp.eq.s32.totalorder %s27, 0
      %p125 = por %p123, %p124
      %p126 = scmp.ne.s32.totalorder %s115, %s118
      %p127 = scmp.eq.s32.totalorder %s32, 1
      %p128 = por %p126, %p127
      %p129 = scmp.ne.s32.totalorder %s118, %s119
      %p130 = scmp.eq.s32.totalorder %s32, 0
      %p131 = por %p129, %p130
      %p132 = scmp.ne.s32.totalorder %s118, %s119
      %p133 = scmp.eq.s32.totalorder %s33, 1
      %p134 = por %p132, %p133
      %p136 = scmp.ne.s32.totalorder %s119, %s135
      %p137 = scmp.eq.s32.totalorder %s33, 0
      %p138 = por %p136, %p137
      %s139 = ssub.s32 %s27, %s34
      %p140 = scmp.eq.s32.totalorder %s139, 0
      %s142 = sadd.s32 %s141, 1
      %s143 = scalar_select %p140, %s141, %s142
      %p146 = pneg %p140
      %p147 = scmp.eq.s32.totalorder %s27, 1
      %p148 = por %p146, %p147
      %p149 = scmp.ne.s32.totalorder %s141, %s144
      %p150 = scmp.eq.s32.totalorder %s27, 0
      %p151 = por %p149, %p150
      %p152 = scmp.ne.s32.totalorder %s141, %s144
      %p153 = scmp.eq.s32.totalorder %s32, 1
      %p154 = por %p152, %p153
      %p155 = scmp.ne.s32.totalorder %s144, %s145
      %p156 = scmp.eq.s32.totalorder %s32, 0
      %p157 = por %p155, %p156
      %p158 = scmp.ne.s32.totalorder %s144, %s145
      %p159 = scmp.eq.s32.totalorder %s33, 1
      %p160 = por %p158, %p159
      %p162 = scmp.ne.s32.totalorder %s145, %s161
      %p163 = scmp.eq.s32.totalorder %s33, 0
      %p164 = por %p162, %p163
      %s165 = ssub.s32 %s27, %s34
      %p166 = scmp.eq.s32.totalorder %s165, 0
      %s168 = sadd.s32 %s167, 1
      %s169 = scalar_select %p166, %s167, %s168
      %p172 = pneg %p166
      %p173 = scmp.eq.s32.totalorder %s27, 1
      %p174 = por %p172, %p173
      %p175 = scmp.ne.s32.totalorder %s167, %s170
      %p176 = scmp.eq.s32.totalorder %s27, 0
      %p177 = por %p175, %p176
      %p178 = scmp.ne.s32.totalorder %s167, %s170
      %p179 = scmp.eq.s32.totalorder %s32, 1
      %p180 = por %p178, %p179
      %p181 = scmp.ne.s32.totalorder %s170, %s171
      %p182 = scmp.eq.s32.totalorder %s32, 0
      %p183 = por %p181, %p182
      %p184 = scmp.ne.s32.totalorder %s170, %s171
      %p185 = scmp.eq.s32.totalorder %s33, 1
      %p186 = por %p184, %p185
      %p188 = scmp.ne.s32.totalorder %s171, %s187
      %p189 = scmp.eq.s32.totalorder %s33, 0
      %p190 = por %p188, %p189
      %s191 = ssub.s32 %s27, %s34
      %p192 = scmp.eq.s32.totalorder %s191, 0
      %s194 = sadd.s32 %s193, 1
      %s195 = scalar_select %p192, %s193, %s194
      %p198 = pneg %p192
      %p199 = scmp.eq.s32.totalorder %s27, 1
      %p200 = por %p198, %p199
      %p201 = scmp.ne.s32.totalorder %s193, %s196
      %p202 = scmp.eq.s32.totalorder %s27, 0
      %p203 = por %p201, %p202
      %p204 = scmp.ne.s32.totalorder %s193, %s196
      %p205 = scmp.eq.s32.totalorder %s32, 1
      %p206 = por %p204, %p205
      %p207 = scmp.ne.s32.totalorder %s196, %s197
      %p208 = scmp.eq.s32.totalorder %s32, 0
      %p209 = por %p207, %p208
      %p210 = scmp.ne.s32.totalorder %s196, %s197
      %p211 = scmp.eq.s32.totalorder %s33, 1
      %p212 = por %p210, %p211
      %p214 = scmp.ne.s32.totalorder %s197, %s213
      %p215 = scmp.eq.s32.totalorder %s33, 0
      %p216 = por %p214, %p215
      %p217 = scmp.le.s32.totalorder 1, %s27
      %p218 = scmp.lt.s32.totalorder %s27, 3
      %p219 = pnand %p217, %p218
      %p220 = pneg %p219
      // Predicated region
      $region9: #{tpu_custom_call.1} parent=5 // pred_check
        _
      $region10: #{tpu_custom_call.1} parent=5 // pred_check_branch
        %222 = sbr.rel (%p219) target = $region12
      $region11: #{tpu_custom_call.1} parent=5 // pred_region
        %s223 = ssub.s32 %s27, 1
      $region12: #{tpu_custom_call.1} parent=5 // pred_fallthru
        _
      %p224 = scmp.lt.s32.totalorder %s27, 2
      // Predicated region
      $region13: #{tpu_custom_call.1} parent=5 // pred_check
        %p225 = pneg %p224
      $region14: #{tpu_custom_call.1} parent=5 // pred_check_branch
        %227 = sbr.rel (%p225) target = $region16
      $region15: #{tpu_custom_call.1} parent=5 // pred_region
        // Predicated region
        $region17: #{tpu_custom_call.1} parent=15 // pred_check
          %p228 = pneg %p47
        $region18: #{tpu_custom_call.1} parent=15 // pred_check_branch
          %230 = sbr.rel (%p228) target = $region20
        $region19: #{tpu_custom_call.1} parent=15 // pred_region
          %s231 = sand.u32 %s37, 1
          %s232 = scalar_lea.sflag [#allocation3], %s231
          %s233 = sand.u32 %s37, 1
          %s234 = smul.addr %s233, 8
          %s235 = scalar_lea.vmem [#allocation2], %s234
          %237 = vsyncadd %s232, 0
          %s238 = smul.addr %s27, 8
          %s239 = scalar_lea.hbm %s0, %s238
          %s241 = sshll.u32 %s239, 4
          %s242 = int_to_ptr.hbm [resolvable:$true] %s241
          %s243 = sshll.u32 %s235, 4
          %s244 = int_to_ptr.vmem [resolvable:$true] %s243
          %246 = dma.hbm_to_vmem [thread:$0]  %s242, 128, %s244, %s232
        $region20: #{tpu_custom_call.1} parent=15 // pred_fallthru
          _
        // Predicated region
        $region21: #{tpu_custom_call.1} parent=15 // pred_check
          %p247 = pneg %p73
        $region22: #{tpu_custom_call.1} parent=15 // pred_check_branch
          %249 = sbr.rel (%p247) target = $region24
        $region23: #{tpu_custom_call.1} parent=15 // pred_region
          %s250 = sand.u32 %s27, 1
          %s251 = scalar_lea.sflag [#allocation6], %s250
          %s252 = sand.u32 %s63, 1
          %s253 = smul.addr %s252, 8
          %s254 = scalar_lea.vmem [#allocation5], %s253
          %256 = vsyncadd %s251, 0
          %s257 = smul.addr %s27, 8
          %s258 = scalar_lea.hbm %s1, %s257
          %s260 = sshll.u32 %s258, 4
          %s261 = int_to_ptr.hbm [resolvable:$true] %s260
          %s262 = sshll.u32 %s254, 4
          %s263 = int_to_ptr.vmem [resolvable:$true] %s262
          %265 = dma.hbm_to_vmem [thread:$0]  %s261, 128, %s263, %s251
        $region24: #{tpu_custom_call.1} parent=15 // pred_fallthru
          _
        // Predicated region
        $region25: #{tpu_custom_call.1} parent=15 // pred_check
          %p266 = pneg %p99
        $region26: #{tpu_custom_call.1} parent=15 // pred_check_branch
          %268 = sbr.rel (%p266) target = $region28
        $region27: #{tpu_custom_call.1} parent=15 // pred_region
          %s269 = sand.u32 %s27, 1
          %s270 = scalar_lea.sflag [#allocation6], %s269
          %s271 = sand.u32 %s89, 1
          %s272 = smul.addr %s271, 8
          %s273 = scalar_lea.vmem [#allocation7], %s272
          %275 = vsyncadd %s270, 0
          %s276 = smul.addr %s27, 8
          %s277 = scalar_lea.hbm %s2, %s276
          %s279 = sshll.u32 %s277, 4
          %s280 = int_to_ptr.hbm [resolvable:$true] %s279
          %s281 = sshll.u32 %s273, 4
          %s282 = int_to_ptr.vmem [resolvable:$true] %s281
          %284 = dma.hbm_to_vmem [thread:$0]  %s280, 128, %s282, %s270
        $region28: #{tpu_custom_call.1} parent=15 // pred_fallthru
          _
        // Predicated region
        $region29: #{tpu_custom_call.1} parent=15 // pred_check
          %p285 = pneg %p125
        $region30: #{tpu_custom_call.1} parent=15 // pred_check_branch
          %287 = sbr.rel (%p285) target = $region32
        $region31: #{tpu_custom_call.1} parent=15 // pred_region
          %s288 = sand.u32 %s27, 1
          %s289 = scalar_lea.sflag [#allocation9], %s288
          %s290 = sand.u32 %s115, 1
          %s291 = smul.addr %s290, 32
          %s292 = scalar_lea.vmem [#allocation8], %s291
          %294 = vsyncadd %s289, 0
          %s295 = smul.addr %s27, 4
          %s296 = smul.addr %s295, 8
          %s297 = scalar_lea.hbm %s3, %s296
          %s299 = sshll.u32 %s297, 4
          %s300 = int_to_ptr.hbm [resolvable:$true] %s299
          %s301 = sshll.u32 %s292, 4
          %s302 = int_to_ptr.vmem [resolvable:$true] %s301
          %304 = dma.hbm_to_vmem [thread:$0]  %s300, 512, %s302, %s289
        $region32: #{tpu_custom_call.1} parent=15 // pred_fallthru
          _
        // Predicated region
        $region33: #{tpu_custom_call.1} parent=15 // pred_check
          %p305 = pneg %p151
        $region34: #{tpu_custom_call.1} parent=15 // pred_check_branch
          %307 = sbr.rel (%p305) target = $region36
        $region35: #{tpu_custom_call.1} parent=15 // pred_region
          %s308 = sand.u32 %s27, 1
          %s309 = scalar_lea.sflag [#allocation9], %s308
          %s310 = sand.u32 %s141, 1
          %s311 = smul.addr %s310, 32
          %s312 = scalar_lea.vmem [#allocation10], %s311
          %314 = vsyncadd %s309, 0
          %s315 = smul.addr %s27, 4
          %s316 = smul.addr %s315, 8
          %s317 = scalar_lea.hbm %s4, %s316
          %s319 = sshll.u32 %s317, 4
          %s320 = int_to_ptr.hbm [resolvable:$true] %s319
          %s321 = sshll.u32 %s312, 4
          %s322 = int_to_ptr.vmem [resolvable:$true] %s321
          %324 = dma.hbm_to_vmem [thread:$0]  %s320, 512, %s322, %s309
        $region36: #{tpu_custom_call.1} parent=15 // pred_fallthru
          _
        // Predicated region
        $region37: #{tpu_custom_call.1} parent=15 // pred_check
          %p325 = pneg %p177
        $region38: #{tpu_custom_call.1} parent=15 // pred_check_branch
          %327 = sbr.rel (%p325) target = $region40
        $region39: #{tpu_custom_call.1} parent=15 // pred_region
          %s328 = sand.u32 %s167, 1
          %s329 = scalar_lea.sflag [#allocation12], %s328
          %s330 = sand.u32 %s167, 1
          %s331 = smul.addr %s330, 32
          %s332 = scalar_lea.vmem [#allocation11], %s331
          %334 = vsyncadd %s329, 0
          %s335 = smul.addr %s27, 4
          %s336 = smul.addr %s335, 8
          %s337 = scalar_lea.hbm %s5, %s336
          %s339 = sshll.u32 %s337, 4
          %s340 = int_to_ptr.hbm [resolvable:$true] %s339
          %s341 = sshll.u32 %s332, 4
          %s342 = int_to_ptr.vmem [resolvable:$true] %s341
          %344 = dma.hbm_to_vmem [thread:$0]  %s340, 512, %s342, %s329
        $region40: #{tpu_custom_call.1} parent=15 // pred_fallthru
          _
      $region16: #{tpu_custom_call.1} parent=5 // pred_fallthru
        _
      %p345 = scmp.le.s32.totalorder 1, %s27
      %p346 = scmp.lt.s32.totalorder %s27, 3
      %p347 = pnand %p345, %p346
      %p348 = pneg %p347
      // Predicated region
      $region41: #{tpu_custom_call.1} parent=5 // pred_check
        _
      $region42: #{tpu_custom_call.1} parent=5 // pred_check_branch
        %350 = sbr.rel (%p347) target = $region44
      $region43: #{tpu_custom_call.1} parent=5 // pred_region
        %s351 = ssub.s32 %s27, 1
        %s352 = sand.u32 %s40, 1
        %s353 = scalar_lea.sflag [#allocation3], %s352
        %s354 = sand.u32 %s40, 1
        %s355 = smul.addr %s354, 8
        %s356 = scalar_lea.vmem [#allocation2], %s355
        // Predicated region
        $region45: #{tpu_custom_call.1} parent=43 // pred_check
          %p357 = pneg %p53
        $region46: #{tpu_custom_call.1} parent=43 // pred_check_branch
          %359 = sbr.rel (%p357) target = $region48
        $region47: #{tpu_custom_call.1} parent=43 // pred_region
          %361 = dma.done %s353, 128
        $region48: #{tpu_custom_call.1} parent=43 // pred_fallthru
          _
        %s362 = sand.u32 %s32, 1
        %s363 = scalar_lea.sflag [#allocation6], %s362
        %s364 = sand.u32 %s66, 1
        %s365 = smul.addr %s364, 8
        %s366 = scalar_lea.vmem [#allocation5], %s365
        // Predicated region
        $region49: #{tpu_custom_call.1} parent=43 // pred_check
          %p367 = pneg %p79
        $region50: #{tpu_custom_call.1} parent=43 // pred_check_branch
          %369 = sbr.rel (%p367) target = $region52
        $region51: #{tpu_custom_call.1} parent=43 // pred_region
          %371 = dma.done %s363, 128
        $region52: #{tpu_custom_call.1} parent=43 // pred_fallthru
          _
        %s372 = sand.u32 %s32, 1
        %s373 = scalar_lea.sflag [#allocation6], %s372
        %s374 = sand.u32 %s92, 1
        %s375 = smul.addr %s374, 8
        %s376 = scalar_lea.vmem [#allocation7], %s375
        // Predicated region
        $region53: #{tpu_custom_call.1} parent=43 // pred_check
          %p377 = pneg %p105
        $region54: #{tpu_custom_call.1} parent=43 // pred_check_branch
          %379 = sbr.rel (%p377) target = $region56
        $region55: #{tpu_custom_call.1} parent=43 // pred_region
          %381 = dma.done %s373, 128
        $region56: #{tpu_custom_call.1} parent=43 // pred_fallthru
          _
        %s382 = sand.u32 %s32, 1
        %s383 = scalar_lea.sflag [#allocation9], %s382
        %s384 = sand.u32 %s118, 1
        %s385 = smul.addr %s384, 32
        %s386 = scalar_lea.vmem [#allocation8], %s385
        // Predicated region
        $region57: #{tpu_custom_call.1} parent=43 // pred_check
          %p387 = pneg %p131
        $region58: #{tpu_custom_call.1} parent=43 // pred_check_branch
          %389 = sbr.rel (%p387) target = $region60
        $region59: #{tpu_custom_call.1} parent=43 // pred_region
          %391 = dma.done %s383, 512
        $region60: #{tpu_custom_call.1} parent=43 // pred_fallthru
          _
        %s392 = sand.u32 %s32, 1
        %s393 = scalar_lea.sflag [#allocation9], %s392
        %s394 = sand.u32 %s144, 1
        %s395 = smul.addr %s394, 32
        %s396 = scalar_lea.vmem [#allocation10], %s395
        // Predicated region
        $region61: #{tpu_custom_call.1} parent=43 // pred_check
          %p397 = pneg %p157
        $region62: #{tpu_custom_call.1} parent=43 // pred_check_branch
          %399 = sbr.rel (%p397) target = $region64
        $region63: #{tpu_custom_call.1} parent=43 // pred_region
          %401 = dma.done %s393, 512
        $region64: #{tpu_custom_call.1} parent=43 // pred_fallthru
          _
        %s402 = sand.u32 %s170, 1
        %s403 = scalar_lea.sflag [#allocation12], %s402
        %s404 = sand.u32 %s170, 1
        %s405 = smul.addr %s404, 32
        %s406 = scalar_lea.vmem [#allocation11], %s405
        // Predicated region
        $region65: #{tpu_custom_call.1} parent=43 // pred_check
          %p407 = pneg %p183
        $region66: #{tpu_custom_call.1} parent=43 // pred_check_branch
          %409 = sbr.rel (%p407) target = $region68
        $region67: #{tpu_custom_call.1} parent=43 // pred_region
          %411 = dma.done %s403, 512
        $region68: #{tpu_custom_call.1} parent=43 // pred_fallthru
          _
        %s412 = sand.u32 %s40, 1
        %s413 = scalar_lea.sflag [#allocation3], %s412
        %s414 = sand.u32 %s40, 1
        %s415 = smul.addr %s414, 8
        %s416 = scalar_lea.vmem [#allocation2], %s415
        %p417 = pneg %p53
        %p418 = pneg %p50
        %s419 = sand.u32 %s32, 1
        %s420 = scalar_lea.sflag [#allocation6], %s419
        %s421 = sand.u32 %s66, 1
        %s422 = smul.addr %s421, 8
        %s423 = scalar_lea.vmem [#allocation5], %s422
        %p424 = pneg %p79
        %p425 = pneg %p76
        %s426 = sand.u32 %s32, 1
        %s427 = scalar_lea.sflag [#allocation6], %s426
        %s428 = sand.u32 %s92, 1
        %s429 = smul.addr %s428, 8
        %s430 = scalar_lea.vmem [#allocation7], %s429
        %p431 = pneg %p105
        %p432 = pneg %p102
        %s433 = sand.u32 %s32, 1
        %s434 = scalar_lea.sflag [#allocation9], %s433
        %s435 = sand.u32 %s118, 1
        %s436 = smul.addr %s435, 32
        %s437 = scalar_lea.vmem [#allocation8], %s436
        %p438 = pneg %p131
        %p439 = pneg %p128
        %s440 = sand.u32 %s32, 1
        %s441 = scalar_lea.sflag [#allocation9], %s440
        %s442 = sand.u32 %s144, 1
        %s443 = smul.addr %s442, 32
        %s444 = scalar_lea.vmem [#allocation10], %s443
        %p445 = pneg %p157
        %p446 = pneg %p154
        %s447 = sand.u32 %s170, 1
        %s448 = scalar_lea.sflag [#allocation12], %s447
        %s449 = sand.u32 %s170, 1
        %s450 = smul.addr %s449, 32
        %s451 = scalar_lea.vmem [#allocation11], %s450
        %p452 = pneg %p183
        %p453 = pneg %p180
        %p454 = pneg %p209
        %p455 = pneg %p206
        %s456 = sand.u32 %s196, 1
        %s457 = scalar_lea.sflag [#allocation4], %s456
        %s458 = sand.u32 %s196, 1
        %s459 = scalar_lea.vmem [#allocation13], %s458
        %v460 = vld [vmem:[%s356] sm:$0xff]
        %v461 = vld [vmem:[%s366] sm:$0xff]
        %v462 = vld [vmem:[%s376] sm:$0xff]
        %vm463 = vcmp.gt.f32.partialorder %v462, 0.5
        %v464 = vsub.f32 %v461, %v460
        %v465 = vmax.f32 %v464, 0.0
        %v466 = vand.u32 2147483647, %v464
        %v467 = vsub.f32 0.0, %v466
        %v468 = vmul.f32 %v467, 1.442695
        %v469 = vpow.pop %v468
        %v470 = vadd.f32 %v469, 1.0
        %v471 = vlog2.pop %v470
        %v472 = vmul.f32 %v471, 0.6931472
        %v473 = vadd.f32 %v465, %v472
        %v474 = vsub.f32 0.0, %v464
        %v475 = vmax.f32 %v474, 0.0
        %v476 = vand.u32 2147483647, %v474
        %v477 = vsub.f32 0.0, %v476
        %v478 = vmul.f32 %v477, 1.442695
        %v479 = vpow.pop %v478
        %v480 = vadd.f32 %v479, 1.0
        %v481 = vlog2.pop %v480
        %v482 = vmul.f32 %v481, 0.6931472
        %v483 = vadd.f32 %v475, %v482
        %484 = vadd.xlane.f32.xlu0 %v462
        %v485 = vpop.xlane.xlu0 %484
        %v486 = vrot.slane %v485, 4
        %v487 = vadd.f32 %v485, %v486
        %v488 = vrot.slane %v487, 2
        %v489 = vadd.f32 %v487, %v488
        %v490 = vrot.slane %v489, 1
        %v491 = vadd.f32 %v489, %v490
        %s492 = vtos %v491
        %s493 = smul.f32 %s492, 3.0
        %v494 = vsel %vm463, -inf, %v473
        %vm496 = vcmp.ge.s32.totalorder %v494, 1073741824
        %v497 = vsel %vm496, 1.0, 0.0
        %498 = vadd.xlane.f32.xlu0 %v497
        %v499 = vpop.xlane.xlu0 %498
        %v500 = vrot.slane %v499, 4
        %v501 = vadd.f32 %v499, %v500
        %v502 = vrot.slane %v501, 2
        %v503 = vadd.f32 %v501, %v502
        %v504 = vrot.slane %v503, 1
        %v505 = vadd.f32 %v503, %v504
        %s506 = vtos %v505
        %v507 = vstv %s506
        %v508 = vstv %s493
        %vm509 = vcmp.ge.f32.partialorder %v507, %v508
        %v510 = vsel %vm509, 1073741824, 0
        %v511 = vor.u32 %v510, 536870912
        %vm512 = vcmp.ge.s32.totalorder %v494, %v511
        %v513 = vsel %vm512, 1.0, 0.0
        %514 = vadd.xlane.f32.xlu0 %v513
        %v515 = vpop.xlane.xlu0 %514
        %v516 = vrot.slane %v515, 4
        %v517 = vadd.f32 %v515, %v516
        %v518 = vrot.slane %v517, 2
        %v519 = vadd.f32 %v517, %v518
        %v520 = vrot.slane %v519, 1
        %v521 = vadd.f32 %v519, %v520
        %s522 = vtos %v521
        %v523 = vstv %s522
        %vm524 = vcmp.ge.f32.partialorder %v523, %v508
        %v525 = vsel %vm524, %v511, %v510
        %v526 = vor.u32 %v525, 268435456
        %vm527 = vcmp.ge.s32.totalorder %v494, %v526
        %v528 = vsel %vm527, 1.0, 0.0
        %529 = vadd.xlane.f32.xlu0 %v528
        %v530 = vpop.xlane.xlu0 %529
        %v531 = vrot.slane %v530, 4
        %v532 = vadd.f32 %v530, %v531
        %v533 = vrot.slane %v532, 2
        %v534 = vadd.f32 %v532, %v533
        %v535 = vrot.slane %v534, 1
        %v536 = vadd.f32 %v534, %v535
        %s537 = vtos %v536
        %v538 = vstv %s537
        %vm539 = vcmp.ge.f32.partialorder %v538, %v508
        %v540 = vsel %vm539, %v526, %v525
        %v541 = vor.u32 %v540, 134217728
        %vm542 = vcmp.ge.s32.totalorder %v494, %v541
        %v543 = vsel %vm542, 1.0, 0.0
        %544 = vadd.xlane.f32.xlu0 %v543
        %v545 = vpop.xlane.xlu0 %544
        %v546 = vrot.slane %v545, 4
        %v547 = vadd.f32 %v545, %v546
        %v548 = vrot.slane %v547, 2
        %v549 = vadd.f32 %v547, %v548
        %v550 = vrot.slane %v549, 1
        %v551 = vadd.f32 %v549, %v550
        %s552 = vtos %v551
        %v553 = vstv %s552
        %vm554 = vcmp.ge.f32.partialorder %v553, %v508
        %v555 = vsel %vm554, %v541, %v540
        %v556 = vor.u32 %v555, 67108864
        %vm557 = vcmp.ge.s32.totalorder %v494, %v556
        %v558 = vsel %vm557, 1.0, 0.0
        %559 = vadd.xlane.f32.xlu0 %v558
        %v560 = vpop.xlane.xlu0 %559
        %v561 = vrot.slane %v560, 4
        %v562 = vadd.f32 %v560, %v561
        %v563 = vrot.slane %v562, 2
        %v564 = vadd.f32 %v562, %v563
        %v565 = vrot.slane %v564, 1
        %v566 = vadd.f32 %v564, %v565
        %s567 = vtos %v566
        %v568 = vstv %s567
        %vm569 = vcmp.ge.f32.partialorder %v568, %v508
        %v570 = vsel %vm569, %v556, %v555
        %v571 = vor.u32 %v570, 33554432
        %vm572 = vcmp.ge.s32.totalorder %v494, %v571
        %v573 = vsel %vm572, 1.0, 0.0
        %574 = vadd.xlane.f32.xlu0 %v573
        %v575 = vpop.xlane.xlu0 %574
        %v576 = vrot.slane %v575, 4
        %v577 = vadd.f32 %v575, %v576
        %v578 = vrot.slane %v577, 2
        %v579 = vadd.f32 %v577, %v578
        %v580 = vrot.slane %v579, 1
        %v581 = vadd.f32 %v579, %v580
        %s582 = vtos %v581
        %v583 = vstv %s582
        %vm584 = vcmp.ge.f32.partialorder %v583, %v508
        %v585 = vsel %vm584, %v571, %v570
        %v586 = vor.u32 %v585, 16777216
        %vm587 = vcmp.ge.s32.totalorder %v494, %v586
        %v588 = vsel %vm587, 1.0, 0.0
        %589 = vadd.xlane.f32.xlu0 %v588
        %v590 = vpop.xlane.xlu0 %589
        %v591 = vrot.slane %v590, 4
        %v592 = vadd.f32 %v590, %v591
        %v593 = vrot.slane %v592, 2
        %v594 = vadd.f32 %v592, %v593
        %v595 = vrot.slane %v594, 1
        %v596 = vadd.f32 %v594, %v595
        %s597 = vtos %v596
        %v598 = vstv %s597
        %vm599 = vcmp.ge.f32.partialorder %v598, %v508
        %v600 = vsel %vm599, %v586, %v585
        %v601 = vor.u32 %v600, 8388608
        %vm602 = vcmp.ge.s32.totalorder %v494, %v601
        %v603 = vsel %vm602, 1.0, 0.0
        %604 = vadd.xlane.f32.xlu0 %v603
        %v605 = vpop.xlane.xlu0 %604
        %v606 = vrot.slane %v605, 4
        %v607 = vadd.f32 %v605, %v606
        %v608 = vrot.slane %v607, 2
        %v609 = vadd.f32 %v607, %v608
        %v610 = vrot.slane %v609, 1
        %v611 = vadd.f32 %v609, %v610
        %s612 = vtos %v611
        %v613 = vstv %s612
        %vm614 = vcmp.ge.f32.partialorder %v613, %v508
        %v615 = vsel %vm614, %v601, %v600
        %v616 = vor.u32 %v615, 4194304
        %vm617 = vcmp.ge.s32.totalorder %v494, %v616
        %v618 = vsel %vm617, 1.0, 0.0
        %619 = vadd.xlane.f32.xlu0 %v618
        %v620 = vpop.xlane.xlu0 %619
        %v621 = vrot.slane %v620, 4
        %v622 = vadd.f32 %v620, %v621
        %v623 = vrot.slane %v622, 2
        %v624 = vadd.f32 %v622, %v623
        %v625 = vrot.slane %v624, 1
        %v626 = vadd.f32 %v624, %v625
        %s627 = vtos %v626
        %v628 = vstv %s627
        %vm629 = vcmp.ge.f32.partialorder %v628, %v508
        %v630 = vsel %vm629, %v616, %v615
        %v631 = vor.u32 %v630, 2097152
        %vm632 = vcmp.ge.s32.totalorder %v494, %v631
        %v633 = vsel %vm632, 1.0, 0.0
        %634 = vadd.xlane.f32.xlu0 %v633
        %v635 = vpop.xlane.xlu0 %634
        %v636 = vrot.slane %v635, 4
        %v637 = vadd.f32 %v635, %v636
        %v638 = vrot.slane %v637, 2
        %v639 = vadd.f32 %v637, %v638
        %v640 = vrot.slane %v639, 1
        %v641 = vadd.f32 %v639, %v640
        %s642 = vtos %v641
        %v643 = vstv %s642
        %vm644 = vcmp.ge.f32.partialorder %v643, %v508
        %v645 = vsel %vm644, %v631, %v630
        %v646 = vor.u32 %v645, 1048576
        %vm647 = vcmp.ge.s32.totalorder %v494, %v646
        %v648 = vsel %vm647, 1.0, 0.0
        %649 = vadd.xlane.f32.xlu0 %v648
        %v650 = vpop.xlane.xlu0 %649
        %v651 = vrot.slane %v650, 4
        %v652 = vadd.f32 %v650, %v651
        %v653 = vrot.slane %v652, 2
        %v654 = vadd.f32 %v652, %v653
        %v655 = vrot.slane %v654, 1
        %v656 = vadd.f32 %v654, %v655
        %s657 = vtos %v656
        %v658 = vstv %s657
        %vm659 = vcmp.ge.f32.partialorder %v658, %v508
        %v660 = vsel %vm659, %v646, %v645
        %v661 = vor.u32 %v660, 524288
        %vm662 = vcmp.ge.s32.totalorder %v494, %v661
        %v663 = vsel %vm662, 1.0, 0.0
        %664 = vadd.xlane.f32.xlu0 %v663
        %v665 = vpop.xlane.xlu0 %664
        %v666 = vrot.slane %v665, 4
        %v667 = vadd.f32 %v665, %v666
        %v668 = vrot.slane %v667, 2
        %v669 = vadd.f32 %v667, %v668
        %v670 = vrot.slane %v669, 1
        %v671 = vadd.f32 %v669, %v670
        %s672 = vtos %v671
        %v673 = vstv %s672
        %vm674 = vcmp.ge.f32.partialorder %v673, %v508
        %v675 = vsel %vm674, %v661, %v660
        %v676 = vor.u32 %v675, 262144
        %vm677 = vcmp.ge.s32.totalorder %v494, %v676
        %v678 = vsel %vm677, 1.0, 0.0
        %679 = vadd.xlane.f32.xlu0 %v678
        %v680 = vpop.xlane.xlu0 %679
        %v681 = vrot.slane %v680, 4
        %v682 = vadd.f32 %v680, %v681
        %v683 = vrot.slane %v682, 2
        %v684 = vadd.f32 %v682, %v683
        %v685 = vrot.slane %v684, 1
        %v686 = vadd.f32 %v684, %v685
        %s687 = vtos %v686
        %v688 = vstv %s687
        %vm689 = vcmp.ge.f32.partialorder %v688, %v508
        %v690 = vsel %vm689, %v676, %v675
        %v691 = vor.u32 %v690, 131072
        %vm692 = vcmp.ge.s32.totalorder %v494, %v691
        %v693 = vsel %vm692, 1.0, 0.0
        %694 = vadd.xlane.f32.xlu0 %v693
        %v695 = vpop.xlane.xlu0 %694
        %v696 = vrot.slane %v695, 4
        %v697 = vadd.f32 %v695, %v696
        %v698 = vrot.slane %v697, 2
        %v699 = vadd.f32 %v697, %v698
        %v700 = vrot.slane %v699, 1
        %v701 = vadd.f32 %v699, %v700
        %s702 = vtos %v701
        %v703 = vstv %s702
        %vm704 = vcmp.ge.f32.partialorder %v703, %v508
        %v705 = vsel %vm704, %v691, %v690
        %v706 = vor.u32 %v705, 65536
        %vm707 = vcmp.ge.s32.totalorder %v494, %v706
        %v708 = vsel %vm707, 1.0, 0.0
        %709 = vadd.xlane.f32.xlu0 %v708
        %v710 = vpop.xlane.xlu0 %709
        %v711 = vrot.slane %v710, 4
        %v712 = vadd.f32 %v710, %v711
        %v713 = vrot.slane %v712, 2
        %v714 = vadd.f32 %v712, %v713
        %v715 = vrot.slane %v714, 1
        %v716 = vadd.f32 %v714, %v715
        %s717 = vtos %v716
        %v718 = vstv %s717
        %vm719 = vcmp.ge.f32.partialorder %v718, %v508
        %v720 = vsel %vm719, %v706, %v705
        %v721 = vor.u32 %v720, 32768
        %vm722 = vcmp.ge.s32.totalorder %v494, %v721
        %v723 = vsel %vm722, 1.0, 0.0
        %724 = vadd.xlane.f32.xlu0 %v723
        %v725 = vpop.xlane.xlu0 %724
        %v726 = vrot.slane %v725, 4
        %v727 = vadd.f32 %v725, %v726
        %v728 = vrot.slane %v727, 2
        %v729 = vadd.f32 %v727, %v728
        %v730 = vrot.slane %v729, 1
        %v731 = vadd.f32 %v729, %v730
        %s732 = vtos %v731
        %v733 = vstv %s732
        %vm734 = vcmp.ge.f32.partialorder %v733, %v508
        %v735 = vsel %vm734, %v721, %v720
        %v736 = vor.u32 %v735, 16384
        %vm737 = vcmp.ge.s32.totalorder %v494, %v736
        %v738 = vsel %vm737, 1.0, 0.0
        %739 = vadd.xlane.f32.xlu0 %v738
        %v740 = vpop.xlane.xlu0 %739
        %v741 = vrot.slane %v740, 4
        %v742 = vadd.f32 %v740, %v741
        %v743 = vrot.slane %v742, 2
        %v744 = vadd.f32 %v742, %v743
        %v745 = vrot.slane %v744, 1
        %v746 = vadd.f32 %v744, %v745
        %s747 = vtos %v746
        %v748 = vstv %s747
        %vm749 = vcmp.ge.f32.partialorder %v748, %v508
        %v750 = vsel %vm749, %v736, %v735
        %v751 = vor.u32 %v750, 8192
        %vm752 = vcmp.ge.s32.totalorder %v494, %v751
        %v753 = vsel %vm752, 1.0, 0.0
        %754 = vadd.xlane.f32.xlu0 %v753
        %v755 = vpop.xlane.xlu0 %754
        %v756 = vrot.slane %v755, 4
        %v757 = vadd.f32 %v755, %v756
        %v758 = vrot.slane %v757, 2
        %v759 = vadd.f32 %v757, %v758
        %v760 = vrot.slane %v759, 1
        %v761 = vadd.f32 %v759, %v760
        %s762 = vtos %v761
        %v763 = vstv %s762
        %vm764 = vcmp.ge.f32.partialorder %v763, %v508
        %v765 = vsel %vm764, %v751, %v750
        %v766 = vor.u32 %v765, 4096
        %vm767 = vcmp.ge.s32.totalorder %v494, %v766
        %v768 = vsel %vm767, 1.0, 0.0
        %769 = vadd.xlane.f32.xlu0 %v768
        %v770 = vpop.xlane.xlu0 %769
        %v771 = vrot.slane %v770, 4
        %v772 = vadd.f32 %v770, %v771
        %v773 = vrot.slane %v772, 2
        %v774 = vadd.f32 %v772, %v773
        %v775 = vrot.slane %v774, 1
        %v776 = vadd.f32 %v774, %v775
        %s777 = vtos %v776
        %v778 = vstv %s777
        %vm779 = vcmp.ge.f32.partialorder %v778, %v508
        %v780 = vsel %vm779, %v766, %v765
        %v781 = vor.u32 %v780, 2048
        %vm782 = vcmp.ge.s32.totalorder %v494, %v781
        %v783 = vsel %vm782, 1.0, 0.0
        %784 = vadd.xlane.f32.xlu0 %v783
        %v785 = vpop.xlane.xlu0 %784
        %v786 = vrot.slane %v785, 4
        %v787 = vadd.f32 %v785, %v786
        %v788 = vrot.slane %v787, 2
        %v789 = vadd.f32 %v787, %v788
        %v790 = vrot.slane %v789, 1
        %v791 = vadd.f32 %v789, %v790
        %s792 = vtos %v791
        %v793 = vstv %s792
        %vm794 = vcmp.ge.f32.partialorder %v793, %v508
        %v795 = vsel %vm794, %v781, %v780
        %v796 = vor.u32 %v795, 1024
        %vm797 = vcmp.ge.s32.totalorder %v494, %v796
        %v798 = vsel %vm797, 1.0, 0.0
        %799 = vadd.xlane.f32.xlu0 %v798
        %v800 = vpop.xlane.xlu0 %799
        %v801 = vrot.slane %v800, 4
        %v802 = vadd.f32 %v800, %v801
        %v803 = vrot.slane %v802, 2
        %v804 = vadd.f32 %v802, %v803
        %v805 = vrot.slane %v804, 1
        %v806 = vadd.f32 %v804, %v805
        %s807 = vtos %v806
        %v808 = vstv %s807
        %vm809 = vcmp.ge.f32.partialorder %v808, %v508
        %v810 = vsel %vm809, %v796, %v795
        %v811 = vor.u32 %v810, 512
        %vm812 = vcmp.ge.s32.totalorder %v494, %v811
        %v813 = vsel %vm812, 1.0, 0.0
        %814 = vadd.xlane.f32.xlu0 %v813
        %v815 = vpop.xlane.xlu0 %814
        %v816 = vrot.slane %v815, 4
        %v817 = vadd.f32 %v815, %v816
        %v818 = vrot.slane %v817, 2
        %v819 = vadd.f32 %v817, %v818
        %v820 = vrot.slane %v819, 1
        %v821 = vadd.f32 %v819, %v820
        %s822 = vtos %v821
        %v823 = vstv %s822
        %vm824 = vcmp.ge.f32.partialorder %v823, %v508
        %v825 = vsel %vm824, %v811, %v810
        %v826 = vor.u32 %v825, 256
        %vm827 = vcmp.ge.s32.totalorder %v494, %v826
        %v828 = vsel %vm827, 1.0, 0.0
        %829 = vadd.xlane.f32.xlu0 %v828
        %v830 = vpop.xlane.xlu0 %829
        %v831 = vrot.slane %v830, 4
        %v832 = vadd.f32 %v830, %v831
        %v833 = vrot.slane %v832, 2
        %v834 = vadd.f32 %v832, %v833
        %v835 = vrot.slane %v834, 1
        %v836 = vadd.f32 %v834, %v835
        %s837 = vtos %v836
        %v838 = vstv %s837
        %vm839 = vcmp.ge.f32.partialorder %v838, %v508
        %v840 = vsel %vm839, %v826, %v825
        %v841 = vor.u32 %v840, 128
        %vm842 = vcmp.ge.s32.totalorder %v494, %v841
        %v843 = vsel %vm842, 1.0, 0.0
        %844 = vadd.xlane.f32.xlu0 %v843
        %v845 = vpop.xlane.xlu0 %844
        %v846 = vrot.slane %v845, 4
        %v847 = vadd.f32 %v845, %v846
        %v848 = vrot.slane %v847, 2
        %v849 = vadd.f32 %v847, %v848
        %v850 = vrot.slane %v849, 1
        %v851 = vadd.f32 %v849, %v850
        %s852 = vtos %v851
        %v853 = vstv %s852
        %vm854 = vcmp.ge.f32.partialorder %v853, %v508
        %v855 = vsel %vm854, %v841, %v840
        %v856 = vor.u32 %v855, 64
        %vm857 = vcmp.ge.s32.totalorder %v494, %v856
        %v858 = vsel %vm857, 1.0, 0.0
        %859 = vadd.xlane.f32.xlu0 %v858
        %v860 = vpop.xlane.xlu0 %859
        %v861 = vrot.slane %v860, 4
        %v862 = vadd.f32 %v860, %v861
        %v863 = vrot.slane %v862, 2
        %v864 = vadd.f32 %v862, %v863
        %v865 = vrot.slane %v864, 1
        %v866 = vadd.f32 %v864, %v865
        %s867 = vtos %v866
        %v868 = vstv %s867
        %vm869 = vcmp.ge.f32.partialorder %v868, %v508
        %v870 = vsel %vm869, %v856, %v855
        %v871 = vor.u32 %v870, 32
        %vm872 = vcmp.ge.s32.totalorder %v494, %v871
        %v873 = vsel %vm872, 1.0, 0.0
        %874 = vadd.xlane.f32.xlu0 %v873
        %v875 = vpop.xlane.xlu0 %874
        %v876 = vrot.slane %v875, 4
        %v877 = vadd.f32 %v875, %v876
        %v878 = vrot.slane %v877, 2
        %v879 = vadd.f32 %v877, %v878
        %v880 = vrot.slane %v879, 1
        %v881 = vadd.f32 %v879, %v880
        %s882 = vtos %v881
        %v883 = vstv %s882
        %vm884 = vcmp.ge.f32.partialorder %v883, %v508
        %v885 = vsel %vm884, %v871, %v870
        %v886 = vor.u32 %v885, 16
        %vm887 = vcmp.ge.s32.totalorder %v494, %v886
        %v888 = vsel %vm887, 1.0, 0.0
        %889 = vadd.xlane.f32.xlu0 %v888
        %v890 = vpop.xlane.xlu0 %889
        %v891 = vrot.slane %v890, 4
        %v892 = vadd.f32 %v890, %v891
        %v893 = vrot.slane %v892, 2
        %v894 = vadd.f32 %v892, %v893
        %v895 = vrot.slane %v894, 1
        %v896 = vadd.f32 %v894, %v895
        %s897 = vtos %v896
        %v898 = vstv %s897
        %vm899 = vcmp.ge.f32.partialorder %v898, %v508
        %v900 = vsel %vm899, %v886, %v885
        %v901 = vor.u32 %v900, 8
        %vm902 = vcmp.ge.s32.totalorder %v494, %v901
        %v903 = vsel %vm902, 1.0, 0.0
        %904 = vadd.xlane.f32.xlu0 %v903
        %v905 = vpop.xlane.xlu0 %904
        %v906 = vrot.slane %v905, 4
        %v907 = vadd.f32 %v905, %v906
        %v908 = vrot.slane %v907, 2
        %v909 = vadd.f32 %v907, %v908
        %v910 = vrot.slane %v909, 1
        %v911 = vadd.f32 %v909, %v910
        %s912 = vtos %v911
        %v913 = vstv %s912
        %vm914 = vcmp.ge.f32.partialorder %v913, %v508
        %v915 = vsel %vm914, %v901, %v900
        %v916 = vor.u32 %v915, 4
        %vm917 = vcmp.ge.s32.totalorder %v494, %v916
        %v918 = vsel %vm917, 1.0, 0.0
        %919 = vadd.xlane.f32.xlu0 %v918
        %v920 = vpop.xlane.xlu0 %919
        %v921 = vrot.slane %v920, 4
        %v922 = vadd.f32 %v920, %v921
        %v923 = vrot.slane %v922, 2
        %v924 = vadd.f32 %v922, %v923
        %v925 = vrot.slane %v924, 1
        %v926 = vadd.f32 %v924, %v925
        %s927 = vtos %v926
        %v928 = vstv %s927
        %vm929 = vcmp.ge.f32.partialorder %v928, %v508
        %v930 = vsel %vm929, %v916, %v915
        %v931 = vor.u32 %v930, 2
        %vm932 = vcmp.ge.s32.totalorder %v494, %v931
        %v933 = vsel %vm932, 1.0, 0.0
        %934 = vadd.xlane.f32.xlu0 %v933
        %v935 = vpop.xlane.xlu0 %934
        %v936 = vrot.slane %v935, 4
        %v937 = vadd.f32 %v935, %v936
        %v938 = vrot.slane %v937, 2
        %v939 = vadd.f32 %v937, %v938
        %v940 = vrot.slane %v939, 1
        %v941 = vadd.f32 %v939, %v940
        %s942 = vtos %v941
        %v943 = vstv %s942
        %vm944 = vcmp.ge.f32.partialorder %v943, %v508
        %v945 = vsel %vm944, %v931, %v930
        %v946 = vor.u32 %v945, 1
        %vm947 = vcmp.ge.s32.totalorder %v494, %v946
        %v948 = vsel %vm947, 1.0, 0.0
        %949 = vadd.xlane.f32.xlu0 %v948
        %v950 = vpop.xlane.xlu0 %949
        %v951 = vrot.slane %v950, 4
        %v952 = vadd.f32 %v950, %v951
        %v953 = vrot.slane %v952, 2
        %v954 = vadd.f32 %v952, %v953
        %v955 = vrot.slane %v954, 1
        %v956 = vadd.f32 %v954, %v955
        %s957 = vtos %v956
        %v958 = vstv %s957
        %vm959 = vcmp.ge.f32.partialorder %v958, %v508
        %v960 = vsel %vm959, %v946, %v945
        %vm961 = vcmp.gt.s32.totalorder %v494, %v960
        %v962 = vsel %vm961, 1.0, 0.0
        %963 = vadd.xlane.f32.xlu0 %v962
        %v964 = vpop.xlane.xlu0 %963
        %v965 = vrot.slane %v964, 4
        %v966 = vadd.f32 %v964, %v965
        %v967 = vrot.slane %v966, 2
        %v968 = vadd.f32 %v966, %v967
        %v969 = vrot.slane %v968, 1
        %v970 = vadd.f32 %v968, %v969
        %s971 = vtos %v970
        %v972 = vsel %vm961, %v494, 0.0
        %973 = vadd.xlane.f32.xlu0 %v972
        %v974 = vpop.xlane.xlu0 %973
        %v975 = vrot.slane %v974, 4
        %v976 = vadd.f32 %v974, %v975
        %v977 = vrot.slane %v976, 2
        %v978 = vadd.f32 %v976, %v977
        %v979 = vrot.slane %v978, 1
        %v980 = vadd.f32 %v978, %v979
        %s981 = vtos %v980
        %vm982 = vcmp.eq.s32.totalorder %v494, %v960
        %v983 = vsel %vm982, %v494, 0.0
        %984 = vmax.xlane.f32.xlu0 %v983
        %v985 = vpop.xlane.xlu0 %984
        %v986 = vrot.slane %v985, 4
        %v987 = vmax.f32 %v985, %v986
        %v988 = vrot.slane %v987, 2
        %v989 = vmax.f32 %v987, %v988
        %v990 = vrot.slane %v989, 1
        %v991 = vmax.f32 %v989, %v990
        %s992 = vtos %v991
        %v993 = vsel %vm463, %v483, 0.0
        %994 = vadd.xlane.f32.xlu0 %v993
        %v995 = vpop.xlane.xlu0 %994
        %v996 = vrot.slane %v995, 4
        %v997 = vadd.f32 %v995, %v996
        %v998 = vrot.slane %v997, 2
        %v999 = vadd.f32 %v997, %v998
        %v1000 = vrot.slane %v999, 1
        %v1001 = vadd.f32 %v999, %v1000
        %s1002 = vtos %v1001
        %s1003 = sadd.f32 %s1002, %s981
        %s1004 = ssub.f32 %s493, %s971
        %s1005 = smul.f32 %s1004, %s992
        %s1006 = sadd.f32 %s1003, %s1005
        %v1007 = vld [vmem:[%s386] sm:$0xff]
        %v1008 = vld [vmem:[%s386 + $0x8] sm:$0xff]
        %v1009 = vld [vmem:[%s386 + $0x10] sm:$0xff]
        %v1010 = vld [vmem:[%s386 + $0x18] sm:$0xff]
        %v1011 = vld [vmem:[%s396] sm:$0xff]
        %v1012 = vld [vmem:[%s396 + $0x8] sm:$0xff]
        %v1013 = vld [vmem:[%s396 + $0x10] sm:$0xff]
        %v1014 = vld [vmem:[%s396 + $0x18] sm:$0xff]
        %v1015 = vsub.f32 %v1007, %v1011
        %v1016 = vsub.f32 %v1008, %v1012
        %v1017 = vsub.f32 %v1009, %v1013
        %v1018 = vsub.f32 %v1010, %v1014
        %v1019 = vand.u32 2147483647, %v1015
        %v1020 = vand.u32 2147483647, %v1016
        %v1021 = vand.u32 2147483647, %v1017
        %v1022 = vand.u32 2147483647, %v1018
        %vm1023 = vcmp.lt.f32.partialorder %v1019, 1.0
        %vm1024 = vcmp.lt.f32.partialorder %v1020, 1.0
        %vm1025 = vcmp.lt.f32.partialorder %v1021, 1.0
        %vm1026 = vcmp.lt.f32.partialorder %v1022, 1.0
        %v1027 = vmul.f32 %v1015, 0.5
        %v1028 = vmul.f32 %v1016, 0.5
        %v1029 = vmul.f32 %v1017, 0.5
        %v1030 = vmul.f32 %v1018, 0.5
        %v1031 = vmul.f32 %v1027, %v1015
        %v1032 = vmul.f32 %v1028, %v1016
        %v1033 = vmul.f32 %v1029, %v1017
        %v1034 = vmul.f32 %v1030, %v1018
        %v1035 = vsub.f32 %v1019, 0.5
        %v1036 = vsub.f32 %v1020, 0.5
        %v1037 = vsub.f32 %v1021, 0.5
        %v1038 = vsub.f32 %v1022, 0.5
        %v1039 = vsel %vm1023, %v1031, %v1035
        %v1040 = vsel %vm1024, %v1032, %v1036
        %v1041 = vsel %vm1025, %v1033, %v1037
        %v1042 = vsel %vm1026, %v1034, %v1038
        %v1043 = vld [vmem:[%s406] sm:$0xff]
        %v1044 = vld [vmem:[%s406 + $0x8] sm:$0xff]
        %v1045 = vld [vmem:[%s406 + $0x10] sm:$0xff]
        %v1046 = vld [vmem:[%s406 + $0x18] sm:$0xff]
        %vm1047 = vcmp.gt.f32.partialorder %v1043, 0.5
        %vm1048 = vcmp.gt.f32.partialorder %v1044, 0.5
        %vm1049 = vcmp.gt.f32.partialorder %v1045, 0.5
        %vm1050 = vcmp.gt.f32.partialorder %v1046, 0.5
        %v1051 = vsel %vm1047, %v1039, 0.0
        %v1052 = vsel %vm1048, %v1040, 0.0
        %v1053 = vsel %vm1049, %v1041, 0.0
        %v1054 = vsel %vm1050, %v1042, 0.0
        %v1055 = vadd.f32 %v1051, %v1052
        %v1056 = vadd.f32 %v1055, %v1053
        %v1057 = vadd.f32 %v1056, %v1054
        %1058 = vadd.xlane.f32.xlu0 %v1057
        %v1059 = vpop.xlane.xlu0 %1058
        %v1060 = vrot.slane %v1059, 4
        %v1061 = vadd.f32 %v1059, %v1060
        %v1062 = vrot.slane %v1061, 2
        %v1063 = vadd.f32 %v1061, %v1062
        %v1064 = vrot.slane %v1063, 1
        %v1065 = vadd.f32 %v1063, %v1064
        %s1066 = vtos %v1065
        %v1067 = vlaneseq
        %v1068 = vand.u32 %v1067, 127
        %vm1069 = vcmp.eq.s32.totalorder %v1068, 0
        %v1070 = vstv %s1066
        %v1071 = vsel %vm1069, %v1070, 0.0
        %vm1072 = vcmp.eq.s32.totalorder %v1068, 1
        %v1073 = vstv %s1006
        %v1074 = vsel %vm1072, %v1073, 0.0
        %v1075 = vadd.f32 %v1071, %v1074
        %vm1076 = vcmp.eq.s32.totalorder %v1068, 2
        %v1077 = vstv %s492
        %v1078 = vsel %vm1076, %v1077, 0.0
        %v1079 = vadd.f32 %v1075, %v1078
        %1080 = vst [vmem:[%s459] sm:$0x1] %v1079
        %s1081 = sand.u32 %s196, 1
        %s1082 = scalar_lea.sflag [#allocation4], %s1081
        %s1083 = sand.u32 %s196, 1
        %s1084 = scalar_lea.vmem [#allocation13], %s1083
        // Predicated region
        $region69: #{tpu_custom_call.1} parent=43 // pred_check
          %p1085 = pneg %p206
        $region70: #{tpu_custom_call.1} parent=43 // pred_check_branch
          %1087 = sbr.rel (%p1085) target = $region72
        $region71: #{tpu_custom_call.1} parent=43 // pred_region
          %1089 = vsyncadd %s1082, 0
          %s1090 = scalar_lea.hbm %s6, %s32
          %s1092 = sshll.u32 %s1084, 4
          %s1093 = int_to_ptr.vmem [resolvable:$true] %s1092
          %s1094 = sshll.u32 %s1090, 4
          %s1095 = int_to_ptr.hbm [resolvable:$true] %s1094
          %1097 = dma.vmem_to_hbm [thread:$0]  %s1093, 16, %s1095, %s1082
        $region72: #{tpu_custom_call.1} parent=43 // pred_fallthru
          _
      $region44: #{tpu_custom_call.1} parent=5 // pred_fallthru
        _
      %p1098 = scmp.le.s32.totalorder 2, %s27
      // Predicated region
      $region73: #{tpu_custom_call.1} parent=5 // pred_check
        %p1099 = pneg %p1098
      $region74: #{tpu_custom_call.1} parent=5 // pred_check_branch
        %1101 = sbr.rel (%p1099) target = $region76
      $region75: #{tpu_custom_call.1} parent=5 // pred_region
        %s1102 = ssub.s32 %s27, 2
        // Predicated region
        $region77: #{tpu_custom_call.1} parent=75 // pred_check
          %p1103 = pneg %p212
        $region78: #{tpu_custom_call.1} parent=75 // pred_check_branch
          %1105 = sbr.rel (%p1103) target = $region80
        $region79: #{tpu_custom_call.1} parent=75 // pred_region
          %s1106 = sand.u32 %s197, 1
          %s1107 = scalar_lea.sflag [#allocation4], %s1106
          %s1108 = sand.u32 %s197, 1
          %s1109 = scalar_lea.vmem [#allocation13], %s1108
          %1111 = dma.done %s1107, 16
        $region80: #{tpu_custom_call.1} parent=75 // pred_fallthru
          _
      $region76: #{tpu_custom_call.1} parent=5 // pred_fallthru
        _
    $region6: #{tpu_custom_call.1} parent=1 // loop_footer
      %s31 = sadd.s32 1, %s27
    $region7: #{tpu_custom_call.1} parent=1 // loop_footer_branch
      %26 = sbr.rel target = $region3
    $region8: #{tpu_custom_call.1} parent=1 // loop_exit
      _
    %1112 = vsyncpa [#allocation3], 1
    %s1113 = scalar_lea.sflag [#allocation3], 1
    %1114 = vsyncpa %s1113, 1
    %1115 = vsyncpa [#allocation6], 1
    %s1116 = scalar_lea.sflag [#allocation6], 1
    %1117 = vsyncpa %s1116, 1
    %1118 = vsyncpa [#allocation9], 1
    %s1119 = scalar_lea.sflag [#allocation9], 1
    %1120 = vsyncpa %s1119, 1
    %1121 = vsyncpa [#allocation12], 1
    %s1122 = scalar_lea.sflag [#allocation12], 1
    %1123 = vsyncpa %s1122, 1
    %1124 = vsyncpa [#allocation4], 1
    %s1125 = scalar_lea.sflag [#allocation4], 1
    %1126 = vsyncpa %s1125, 1

</llo_original>
